<compile_context>
chip_gen: v5e
topology: v5e:2x2
jax: 0.10.0
libtpu: 0.0.40
codegen_flags: <defaults>
</compile_context>

<pallas_src>
import math
import string

import jax
import jax.numpy as jnp
from jax.experimental import pallas as pl
from jax.experimental.pallas import tpu as pltpu

all_letters = string.ascii_letters + '.,;'
n_letters = len(all_letters)      # 55  (input_size)
n_hidden = 64                     # hidden_size
n_categories = 18                 # output_size (synthetic: all_categories placeholder)

H = n_hidden
HP = 128                          # lane-aligned (padded) hidden width
OP = 128                          # lane-aligned (padded) output width

# Padded gate lane layout: slot 0 = i, slot 1 = f, slot 2 = o, slot 3 = g
# (so lanes [0 : 3*HP] are the three sigmoid gates, [3*HP : 4*HP] is tanh).
_GATE_SLOT = {0: 0, 1: 1, 2: 3, 3: 2}   # PyTorch gate idx (i,f,g,o) -> padded slot


def lstm_kernel(x_ref, h0_ref, c0_ref,
                w_ih_ref, w_hh_ref, b_ref,
                w_lin_ref, b_lin_ref,
                logp_ref, hn_ref, cn_ref):
    S = x_ref.shape[0]

    # (1) Hoisted input projection: one bf16 matmul for all timesteps, kept as a
    #     vreg-resident value (S*4*HP f32 is only a handful of vregs for names).
    xp = (jnp.dot(x_ref[...], w_ih_ref[...],
                  preferred_element_type=jnp.float32)
          + b_ref[...])                                              # (S, 4*HP) f32

    w_hh = w_hh_ref[...]                                             # (HP, 4*HP) bf16
    h = h0_ref[...]                                                  # (1, HP) f32
    c = c0_ref[...]                                                  # (1, HP) f32

    # (2) Recurrence: S is static & small (character-level names) -> fully
    #     unrolled Python loop; h/c never touch VMEM inside the loop.
    h_rows = []
    for t in range(S):
        gates = xp[t:t + 1, :] + jnp.dot(h.astype(jnp.bfloat16), w_hh,
                                         preferred_element_type=jnp.float32)
        sig = jax.nn.sigmoid(gates[:, :3 * HP])                      # i | f | o fused
        i_g = sig[:, 0 * HP:1 * HP]
        f_g = sig[:, 1 * HP:2 * HP]
        o_g = sig[:, 2 * HP:3 * HP]
        g_g = jnp.tanh(gates[:, 3 * HP:4 * HP])

        c = f_g * c + i_g * g_g
        h = o_g * jnp.tanh(c)
        h_rows.append(h)

    hn_ref[...] = h
    cn_ref[...] = c

    # (3) Hoisted output head: one lane-dense (S, HP) block, one bf16 matmul,
    #     one vectorized log-softmax, one bulk (S, OP) store.
    hs = jnp.concatenate(h_rows, axis=0)                             # (S, HP) f32
    logits = (jnp.dot(hs.astype(jnp.bfloat16), w_lin_ref[...],
                      preferred_element_type=jnp.float32)
              + b_lin_ref[...])                                      # (S, OP) f32
    m = jnp.max(logits, axis=-1, keepdims=True)
    lse = jnp.log(jnp.sum(jnp.exp(logits - m), axis=-1, keepdims=True)) + m
    logp_ref[...] = logits - lse


def prepare_params(params):
    """One-time padding/packing of weights (call once, reuse across forwards).

    Per-gate blocks padded 64 -> 128 and reordered to [i, f, o, g]; output padded
    18 -> 128; matmul operands stored in bf16, biases stay f32.
    """
    w_ih_t = params["w_ih"].T.astype(jnp.float32)                    # (n_letters, 4H)
    w_hh_t = params["w_hh"].T.astype(jnp.float32)                    # (H, 4H)
    b = (params["b_ih"] + params["b_hh"]).astype(jnp.float32)        # (4H,)

    w_ih_pad = jnp.zeros((n_letters, 4 * HP), jnp.float32)
    w_hh_pad = jnp.zeros((HP, 4 * HP), jnp.float32)
    b_pad = jnp.zeros((1, 4 * HP), jnp.float32)
    for k in range(4):                                               # i, f, g, o
        s = _GATE_SLOT[k]
        w_ih_pad = w_ih_pad.at[:, s * HP:s * HP + H].set(w_ih_t[:, k * H:(k + 1) * H])
        w_hh_pad = w_hh_pad.at[:H, s * HP:s * HP + H].set(w_hh_t[:, k * H:(k + 1) * H])
        b_pad = b_pad.at[0, s * HP:s * HP + H].set(b[k * H:(k + 1) * H])

    w_lin_pad = jnp.zeros((HP, OP), jnp.float32)
    w_lin_pad = w_lin_pad.at[:H, :n_categories].set(
        params["w_lin"].T.astype(jnp.float32))
    # Padded logits get a huge (finite!) negative bias so they drop out of softmax.
    b_lin_pad = jnp.full((1, OP), -1e9, jnp.float32)
    b_lin_pad = b_lin_pad.at[0, :n_categories].set(
        params["b_lin"].astype(jnp.float32))

    return {
        "w_ih_pad": w_ih_pad.astype(jnp.bfloat16),
        "w_hh_pad": w_hh_pad.astype(jnp.bfloat16),
        "b_pad": b_pad,                                              # f32
        "w_lin_pad": w_lin_pad.astype(jnp.bfloat16),
        "b_lin_pad": b_lin_pad,                                      # f32
    }


@jax.jit
def lstm_forward(x, hidden, c, padded):
    """x: (S, 1, n_letters); hidden/c: (1, 1, H). Returns (logp (S,1,O), hn, cn)."""
    S = x.shape[0]
    x2 = x.reshape(S, n_letters).astype(jnp.bfloat16)                # one-hot: exact
    h0 = jnp.zeros((1, HP), jnp.float32).at[:, :H].set(
        hidden.reshape(1, H).astype(jnp.float32))
    c0 = jnp.zeros((1, HP), jnp.float32).at[:, :H].set(
        c.reshape(1, H).astype(jnp.float32))

    vmem = pl.BlockSpec(memory_space=pltpu.MemorySpace.VMEM)

    flops = 2 * S * (n_letters * 4 * HP + HP * 4 * HP + HP * OP) + 10 * S * HP
    transcendentals = S * (5 * HP + OP)
    bytes_accessed = (2 * x2.size
                      + 2 * (padded["w_ih_pad"].size + padded["w_hh_pad"].size
                             + padded["w_lin_pad"].size)
                      + 4 * (h0.size + c0.size + padded["b_pad"].size
                             + padded["b_lin_pad"].size + S * OP + 2 * HP))

    logp, hn, cn = pl.pallas_call(
        lstm_kernel,
        out_shape=(
            jax.ShapeDtypeStruct((S, OP), jnp.float32),   # lane-dense padded output
            jax.ShapeDtypeStruct((1, HP), jnp.float32),
            jax.ShapeDtypeStruct((1, HP), jnp.float32),
        ),
        in_specs=[vmem] * 8,
        out_specs=(vmem, vmem, vmem),
        cost_estimate=pl.CostEstimate(flops=flops,
                                      transcendentals=transcendentals,
                                      bytes_accessed=bytes_accessed),
    )(x2, h0, c0,
      padded["w_ih_pad"], padded["w_hh_pad"], padded["b_pad"],
      padded["w_lin_pad"], padded["b_lin_pad"])

    return (logp[:, :n_categories].reshape(S, 1, n_categories),
            hn[:, :H].reshape(1, 1, H),
            cn[:, :H].reshape(1, 1, H))


def init_params(key):
    """Deterministic init mimicking PyTorch defaults (uniform(-1/sqrt(H), 1/sqrt(H)))."""
    k = 1.0 / math.sqrt(H)
    ks = jax.random.split(key, 6)
    u = lambda kk, shape: jax.random.uniform(kk, shape, jnp.float32, -k, k)
    return {
        "w_ih": u(ks[0], (4 * H, n_letters)),
        "w_hh": u(ks[1], (4 * H, H)),
        "b_ih": u(ks[2], (4 * H,)),
        "b_hh": u(ks[3], (4 * H,)),
        "w_lin": u(ks[4], (n_categories, H)),
        "b_lin": u(ks[5], (n_categories,)),
    }


def reference_forward(x, hidden, c, params):
    """Plain-JAX f32 reference of the same forward pass (for verification)."""
    S = x.shape[0]
    h = hidden.reshape(1, H)
    cc = c.reshape(1, H)
    outs = []
    for t in range(S):
        xt = x[t].reshape(1, n_letters)
        gates = xt @ params["w_ih"].T + h @ params["w_hh"].T + params["b_ih"] + params["b_hh"]
        i_g = jax.nn.sigmoid(gates[:, 0 * H:1 * H])
        f_g = jax.nn.sigmoid(gates[:, 1 * H:2 * H])
        g_g = jnp.tanh(gates[:, 2 * H:3 * H])
        o_g = jax.nn.sigmoid(gates[:, 3 * H:4 * H])
        cc = f_g * cc + i_g * g_g
        h = o_g * jnp.tanh(cc)
        logits = h @ params["w_lin"].T + params["b_lin"]
        outs.append(jax.nn.log_softmax(logits, axis=-1))
    return (jnp.stack(outs, 0).reshape(S, 1, n_categories),
            h.reshape(1, 1, H), cc.reshape(1, 1, H))


def line_to_tensor(line):
    t = jnp.zeros((len(line), 1, n_letters), jnp.float32)
    for li, letter in enumerate(line):
        t = t.at[li, 0, all_letters.find(letter)].set(1.0)
    return t


if __name__ == "__main__":
    key = jax.random.PRNGKey(0)
    params = init_params(key)
    padded = prepare_params(params)                    # one-time packing (cached)

    # One-hot encoded name, seq_len=6, batch=1 (matches lineToTensor semantics).
    x = line_to_tensor("Bakker")                       # (6, 1, 55)
    hidden = jnp.zeros((1, 1, n_hidden), jnp.float32)  # initHiddenAndC()
    c = jnp.zeros((1, 1, n_hidden), jnp.float32)

    logp, hn, cn = lstm_forward(x, hidden, c, padded)
    jax.block_until_ready((logp, hn, cn))

    ref_logp, ref_hn, ref_cn = reference_forward(x, hidden, c, params)
    # bf16 MXU operands (f32 accumulation) -> relaxed tolerance vs the f32 reference.
    assert jnp.allclose(logp, ref_logp, atol=3e-2), "log-softmax output mismatch"
    assert jnp.allclose(hn, ref_hn, atol=3e-2), "hn mismatch"
    assert jnp.allclose(cn, ref_cn, atol=3e-2), "cn mismatch"

    print("KERNEL_OK")
</pallas_src>

<mosaic_0001>
module attributes {stable_mosaic.version = 11 : i64} {
  func.func @lstm_kernel(%arg0: memref<6x55xbf16, #tpu.memory_space<vmem>>, %arg1: memref<1x128xf32, #tpu.memory_space<vmem>>, %arg2: memref<1x128xf32, #tpu.memory_space<vmem>>, %arg3: memref<55x512xbf16, #tpu.memory_space<vmem>>, %arg4: memref<128x512xbf16, #tpu.memory_space<vmem>>, %arg5: memref<1x512xf32, #tpu.memory_space<vmem>>, %arg6: memref<128x128xbf16, #tpu.memory_space<vmem>>, %arg7: memref<1x128xf32, #tpu.memory_space<vmem>>, %arg8: memref<6x128xf32, #tpu.memory_space<vmem>>, %arg9: memref<1x128xf32, #tpu.memory_space<vmem>>, %arg10: memref<1x128xf32, #tpu.memory_space<vmem>>) attributes {dimension_semantics = [], scalar_prefetch = 0 : i64, scratch_operands = 0 : i64, tpu.core_type = #tpu.core_type<tc>} {
    %c0 = arith.constant 0 : index
    %c0_0 = arith.constant 0 : index
    %0 = vector.load %arg0[%c0, %c0_0] : memref<6x55xbf16, #tpu.memory_space<vmem>>, vector<6x55xbf16>
    %c0_1 = arith.constant 0 : index
    %c0_2 = arith.constant 0 : index
    %1 = vector.load %arg3[%c0_1, %c0_2] : memref<55x512xbf16, #tpu.memory_space<vmem>>, vector<55x512xbf16>
    %cst = arith.constant dense<0.000000e+00> : vector<6x512xf32>
    %2 = tpu.matmul %0, %1, %cst {dimension_numbers = #tpu.dot_dimension_numbers<[1], [0], [0], [1], [0, 0, 1, 1], [], []>} : vector<6x55xbf16>, vector<55x512xbf16>, vector<6x512xf32> -> vector<6x512xf32>
    %c0_3 = arith.constant 0 : index
    %c0_4 = arith.constant 0 : index
    %3 = vector.load %arg5[%c0_3, %c0_4] : memref<1x512xf32, #tpu.memory_space<vmem>>, vector<1x512xf32>
    %4 = vector.broadcast %3 : vector<1x512xf32> to vector<6x512xf32>
    %5 = arith.addf %2, %4 : vector<6x512xf32>
    %c0_5 = arith.constant 0 : index
    %c0_6 = arith.constant 0 : index
    %6 = vector.load %arg4[%c0_5, %c0_6] : memref<128x512xbf16, #tpu.memory_space<vmem>>, vector<128x512xbf16>
    %c0_7 = arith.constant 0 : index
    %c0_8 = arith.constant 0 : index
    %7 = vector.load %arg1[%c0_7, %c0_8] : memref<1x128xf32, #tpu.memory_space<vmem>>, vector<1x128xf32>
    %c0_9 = arith.constant 0 : index
    %c0_10 = arith.constant 0 : index
    %8 = vector.load %arg2[%c0_9, %c0_10] : memref<1x128xf32, #tpu.memory_space<vmem>>, vector<1x128xf32>
    %9 = vector.extract_strided_slice %5 {offsets = [0, 0], sizes = [1, 512], strides = [1, 1]} : vector<6x512xf32> to vector<1x512xf32>
    %10 = arith.truncf %7 : vector<1x128xf32> to vector<1x128xbf16>
    %cst_11 = arith.constant dense<0.000000e+00> : vector<1x512xf32>
    %11 = tpu.matmul %10, %6, %cst_11 {dimension_numbers = #tpu.dot_dimension_numbers<[1], [0], [0], [1], [0, 0, 1, 1], [], []>} : vector<1x128xbf16>, vector<128x512xbf16>, vector<1x512xf32> -> vector<1x512xf32>
    %12 = arith.addf %9, %11 : vector<1x512xf32>
    %13 = vector.extract_strided_slice %12 {offsets = [0, 0], sizes = [1, 384], strides = [1, 1]} : vector<1x512xf32> to vector<1x384xf32>
    %14 = arith.negf %13 : vector<1x384xf32>
    %15 = math.exp %14 : vector<1x384xf32>
    %cst_12 = arith.constant 1.000000e+00 : f32
    %16 = vector.broadcast %cst_12 : f32 to vector<1x384xf32>
    %17 = arith.addf %16, %15 : vector<1x384xf32>
    %18 = arith.divf %16, %17 : vector<1x384xf32>
    %19 = vector.extract_strided_slice %18 {offsets = [0, 0], sizes = [1, 128], strides = [1, 1]} : vector<1x384xf32> to vector<1x128xf32>
    %20 = vector.extract_strided_slice %18 {offsets = [0, 128], sizes = [1, 128], strides = [1, 1]} : vector<1x384xf32> to vector<1x128xf32>
    %21 = vector.extract_strided_slice %18 {offsets = [0, 256], sizes = [1, 128], strides = [1, 1]} : vector<1x384xf32> to vector<1x128xf32>
    %22 = vector.extract_strided_slice %12 {offsets = [0, 384], sizes = [1, 128], strides = [1, 1]} : vector<1x512xf32> to vector<1x128xf32>
    %23 = math.tanh %22 : vector<1x128xf32>
    %24 = arith.mulf %20, %8 : vector<1x128xf32>
    %25 = arith.mulf %19, %23 : vector<1x128xf32>
    %26 = arith.addf %24, %25 : vector<1x128xf32>
    %27 = math.tanh %26 : vector<1x128xf32>
    %28 = arith.mulf %21, %27 : vector<1x128xf32>
    %29 = vector.extract_strided_slice %5 {offsets = [1, 0], sizes = [1, 512], strides = [1, 1]} : vector<6x512xf32> to vector<1x512xf32>
    %30 = arith.truncf %28 : vector<1x128xf32> to vector<1x128xbf16>
    %cst_13 = arith.constant dense<0.000000e+00> : vector<1x512xf32>
    %31 = tpu.matmul %30, %6, %cst_13 {dimension_numbers = #tpu.dot_dimension_numbers<[1], [0], [0], [1], [0, 0, 1, 1], [], []>} : vector<1x128xbf16>, vector<128x512xbf16>, vector<1x512xf32> -> vector<1x512xf32>
    %32 = arith.addf %29, %31 : vector<1x512xf32>
    %33 = vector.extract_strided_slice %32 {offsets = [0, 0], sizes = [1, 384], strides = [1, 1]} : vector<1x512xf32> to vector<1x384xf32>
    %34 = arith.negf %33 : vector<1x384xf32>
    %35 = math.exp %34 : vector<1x384xf32>
    %cst_14 = arith.constant 1.000000e+00 : f32
    %36 = vector.broadcast %cst_14 : f32 to vector<1x384xf32>
    %37 = arith.addf %36, %35 : vector<1x384xf32>
    %38 = arith.divf %36, %37 : vector<1x384xf32>
    %39 = vector.extract_strided_slice %38 {offsets = [0, 0], sizes = [1, 128], strides = [1, 1]} : vector<1x384xf32> to vector<1x128xf32>
    %40 = vector.extract_strided_slice %38 {offsets = [0, 128], sizes = [1, 128], strides = [1, 1]} : vector<1x384xf32> to vector<1x128xf32>
    %41 = vector.extract_strided_slice %38 {offsets = [0, 256], sizes = [1, 128], strides = [1, 1]} : vector<1x384xf32> to vector<1x128xf32>
    %42 = vector.extract_strided_slice %32 {offsets = [0, 384], sizes = [1, 128], strides = [1, 1]} : vector<1x512xf32> to vector<1x128xf32>
    %43 = math.tanh %42 : vector<1x128xf32>
    %44 = arith.mulf %40, %26 : vector<1x128xf32>
    %45 = arith.mulf %39, %43 : vector<1x128xf32>
    %46 = arith.addf %44, %45 : vector<1x128xf32>
    %47 = math.tanh %46 : vector<1x128xf32>
    %48 = arith.mulf %41, %47 : vector<1x128xf32>
    %49 = vector.extract_strided_slice %5 {offsets = [2, 0], sizes = [1, 512], strides = [1, 1]} : vector<6x512xf32> to vector<1x512xf32>
    %50 = arith.truncf %48 : vector<1x128xf32> to vector<1x128xbf16>
    %cst_15 = arith.constant dense<0.000000e+00> : vector<1x512xf32>
    %51 = tpu.matmul %50, %6, %cst_15 {dimension_numbers = #tpu.dot_dimension_numbers<[1], [0], [0], [1], [0, 0, 1, 1], [], []>} : vector<1x128xbf16>, vector<128x512xbf16>, vector<1x512xf32> -> vector<1x512xf32>
    %52 = arith.addf %49, %51 : vector<1x512xf32>
    %53 = vector.extract_strided_slice %52 {offsets = [0, 0], sizes = [1, 384], strides = [1, 1]} : vector<1x512xf32> to vector<1x384xf32>
    %54 = arith.negf %53 : vector<1x384xf32>
    %55 = math.exp %54 : vector<1x384xf32>
    %cst_16 = arith.constant 1.000000e+00 : f32
    %56 = vector.broadcast %cst_16 : f32 to vector<1x384xf32>
    %57 = arith.addf %56, %55 : vector<1x384xf32>
    %58 = arith.divf %56, %57 : vector<1x384xf32>
    %59 = vector.extract_strided_slice %58 {offsets = [0, 0], sizes = [1, 128], strides = [1, 1]} : vector<1x384xf32> to vector<1x128xf32>
    %60 = vector.extract_strided_slice %58 {offsets = [0, 128], sizes = [1, 128], strides = [1, 1]} : vector<1x384xf32> to vector<1x128xf32>
    %61 = vector.extract_strided_slice %58 {offsets = [0, 256], sizes = [1, 128], strides = [1, 1]} : vector<1x384xf32> to vector<1x128xf32>
    %62 = vector.extract_strided_slice %52 {offsets = [0, 384], sizes = [1, 128], strides = [1, 1]} : vector<1x512xf32> to vector<1x128xf32>
    %63 = math.tanh %62 : vector<1x128xf32>
    %64 = arith.mulf %60, %46 : vector<1x128xf32>
    %65 = arith.mulf %59, %63 : vector<1x128xf32>
    %66 = arith.addf %64, %65 : vector<1x128xf32>
    %67 = math.tanh %66 : vector<1x128xf32>
    %68 = arith.mulf %61, %67 : vector<1x128xf32>
    %69 = vector.extract_strided_slice %5 {offsets = [3, 0], sizes = [1, 512], strides = [1, 1]} : vector<6x512xf32> to vector<1x512xf32>
    %70 = arith.truncf %68 : vector<1x128xf32> to vector<1x128xbf16>
    %cst_17 = arith.constant dense<0.000000e+00> : vector<1x512xf32>
    %71 = tpu.matmul %70, %6, %cst_17 {dimension_numbers = #tpu.dot_dimension_numbers<[1], [0], [0], [1], [0, 0, 1, 1], [], []>} : vector<1x128xbf16>, vector<128x512xbf16>, vector<1x512xf32> -> vector<1x512xf32>
    %72 = arith.addf %69, %71 : vector<1x512xf32>
    %73 = vector.extract_strided_slice %72 {offsets = [0, 0], sizes = [1, 384], strides = [1, 1]} : vector<1x512xf32> to vector<1x384xf32>
    %74 = arith.negf %73 : vector<1x384xf32>
    %75 = math.exp %74 : vector<1x384xf32>
    %cst_18 = arith.constant 1.000000e+00 : f32
    %76 = vector.broadcast %cst_18 : f32 to vector<1x384xf32>
    %77 = arith.addf %76, %75 : vector<1x384xf32>
    %78 = arith.divf %76, %77 : vector<1x384xf32>
    %79 = vector.extract_strided_slice %78 {offsets = [0, 0], sizes = [1, 128], strides = [1, 1]} : vector<1x384xf32> to vector<1x128xf32>
    %80 = vector.extract_strided_slice %78 {offsets = [0, 128], sizes = [1, 128], strides = [1, 1]} : vector<1x384xf32> to vector<1x128xf32>
    %81 = vector.extract_strided_slice %78 {offsets = [0, 256], sizes = [1, 128], strides = [1, 1]} : vector<1x384xf32> to vector<1x128xf32>
    %82 = vector.extract_strided_slice %72 {offsets = [0, 384], sizes = [1, 128], strides = [1, 1]} : vector<1x512xf32> to vector<1x128xf32>
    %83 = math.tanh %82 : vector<1x128xf32>
    %84 = arith.mulf %80, %66 : vector<1x128xf32>
    %85 = arith.mulf %79, %83 : vector<1x128xf32>
    %86 = arith.addf %84, %85 : vector<1x128xf32>
    %87 = math.tanh %86 : vector<1x128xf32>
    %88 = arith.mulf %81, %87 : vector<1x128xf32>
    %89 = vector.extract_strided_slice %5 {offsets = [4, 0], sizes = [1, 512], strides = [1, 1]} : vector<6x512xf32> to vector<1x512xf32>
    %90 = arith.truncf %88 : vector<1x128xf32> to vector<1x128xbf16>
    %cst_19 = arith.constant dense<0.000000e+00> : vector<1x512xf32>
    %91 = tpu.matmul %90, %6, %cst_19 {dimension_numbers = #tpu.dot_dimension_numbers<[1], [0], [0], [1], [0, 0, 1, 1], [], []>} : vector<1x128xbf16>, vector<128x512xbf16>, vector<1x512xf32> -> vector<1x512xf32>
    %92 = arith.addf %89, %91 : vector<1x512xf32>
    %93 = vector.extract_strided_slice %92 {offsets = [0, 0], sizes = [1, 384], strides = [1, 1]} : vector<1x512xf32> to vector<1x384xf32>
    %94 = arith.negf %93 : vector<1x384xf32>
    %95 = math.exp %94 : vector<1x384xf32>
    %cst_20 = arith.constant 1.000000e+00 : f32
    %96 = vector.broadcast %cst_20 : f32 to vector<1x384xf32>
    %97 = arith.addf %96, %95 : vector<1x384xf32>
    %98 = arith.divf %96, %97 : vector<1x384xf32>
    %99 = vector.extract_strided_slice %98 {offsets = [0, 0], sizes = [1, 128], strides = [1, 1]} : vector<1x384xf32> to vector<1x128xf32>
    %100 = vector.extract_strided_slice %98 {offsets = [0, 128], sizes = [1, 128], strides = [1, 1]} : vector<1x384xf32> to vector<1x128xf32>
    %101 = vector.extract_strided_slice %98 {offsets = [0, 256], sizes = [1, 128], strides = [1, 1]} : vector<1x384xf32> to vector<1x128xf32>
    %102 = vector.extract_strided_slice %92 {offsets = [0, 384], sizes = [1, 128], strides = [1, 1]} : vector<1x512xf32> to vector<1x128xf32>
    %103 = math.tanh %102 : vector<1x128xf32>
    %104 = arith.mulf %100, %86 : vector<1x128xf32>
    %105 = arith.mulf %99, %103 : vector<1x128xf32>
    %106 = arith.addf %104, %105 : vector<1x128xf32>
    %107 = math.tanh %106 : vector<1x128xf32>
    %108 = arith.mulf %101, %107 : vector<1x128xf32>
    %109 = vector.extract_strided_slice %5 {offsets = [5, 0], sizes = [1, 512], strides = [1, 1]} : vector<6x512xf32> to vector<1x512xf32>
    %110 = arith.truncf %108 : vector<1x128xf32> to vector<1x128xbf16>
    %cst_21 = arith.constant dense<0.000000e+00> : vector<1x512xf32>
    %111 = tpu.matmul %110, %6, %cst_21 {dimension_numbers = #tpu.dot_dimension_numbers<[1], [0], [0], [1], [0, 0, 1, 1], [], []>} : vector<1x128xbf16>, vector<128x512xbf16>, vector<1x512xf32> -> vector<1x512xf32>
    %112 = arith.addf %109, %111 : vector<1x512xf32>
    %113 = vector.extract_strided_slice %112 {offsets = [0, 0], sizes = [1, 384], strides = [1, 1]} : vector<1x512xf32> to vector<1x384xf32>
    %114 = arith.negf %113 : vector<1x384xf32>
    %115 = math.exp %114 : vector<1x384xf32>
    %cst_22 = arith.constant 1.000000e+00 : f32
    %116 = vector.broadcast %cst_22 : f32 to vector<1x384xf32>
    %117 = arith.addf %116, %115 : vector<1x384xf32>
    %118 = arith.divf %116, %117 : vector<1x384xf32>
    %119 = vector.extract_strided_slice %118 {offsets = [0, 0], sizes = [1, 128], strides = [1, 1]} : vector<1x384xf32> to vector<1x128xf32>
    %120 = vector.extract_strided_slice %118 {offsets = [0, 128], sizes = [1, 128], strides = [1, 1]} : vector<1x384xf32> to vector<1x128xf32>
    %121 = vector.extract_strided_slice %118 {offsets = [0, 256], sizes = [1, 128], strides = [1, 1]} : vector<1x384xf32> to vector<1x128xf32>
    %122 = vector.extract_strided_slice %112 {offsets = [0, 384], sizes = [1, 128], strides = [1, 1]} : vector<1x512xf32> to vector<1x128xf32>
    %123 = math.tanh %122 : vector<1x128xf32>
    %124 = arith.mulf %120, %106 : vector<1x128xf32>
    %125 = arith.mulf %119, %123 : vector<1x128xf32>
    %126 = arith.addf %124, %125 : vector<1x128xf32>
    %127 = math.tanh %126 : vector<1x128xf32>
    %128 = arith.mulf %121, %127 : vector<1x128xf32>
    %c0_23 = arith.constant 0 : index
    %c0_24 = arith.constant 0 : index
    %129 = vector.load %arg9[%c0_23, %c0_24] : memref<1x128xf32, #tpu.memory_space<vmem>>, vector<1x128xf32>
    tpu.vector_store %arg9[%c0_23, %c0_24], %128 {strides = array<i32>} : memref<1x128xf32, #tpu.memory_space<vmem>>, vector<1x128xf32>,
    %c0_25 = arith.constant 0 : index
    %c0_26 = arith.constant 0 : index
    %130 = vector.load %arg10[%c0_25, %c0_26] : memref<1x128xf32, #tpu.memory_space<vmem>>, vector<1x128xf32>
    tpu.vector_store %arg10[%c0_25, %c0_26], %126 {strides = array<i32>} : memref<1x128xf32, #tpu.memory_space<vmem>>, vector<1x128xf32>,
    %131 = tpu.concatenate %28, %48, %68, %88, %108, %128 in 0 : vector<1x128xf32>, vector<1x128xf32>, vector<1x128xf32>, vector<1x128xf32>, vector<1x128xf32>, vector<1x128xf32> -> vector<6x128xf32>
    %132 = arith.truncf %131 : vector<6x128xf32> to vector<6x128xbf16>
    %c0_27 = arith.constant 0 : index
    %c0_28 = arith.constant 0 : index
    %133 = vector.load %arg6[%c0_27, %c0_28] : memref<128x128xbf16, #tpu.memory_space<vmem>>, vector<128x128xbf16>
    %cst_29 = arith.constant dense<0.000000e+00> : vector<6x128xf32>
    %134 = tpu.matmul %132, %133, %cst_29 {dimension_numbers = #tpu.dot_dimension_numbers<[1], [0], [0], [1], [0, 0, 1, 1], [], []>} : vector<6x128xbf16>, vector<128x128xbf16>, vector<6x128xf32> -> vector<6x128xf32>
    %c0_30 = arith.constant 0 : index
    %c0_31 = arith.constant 0 : index
    %135 = vector.load %arg7[%c0_30, %c0_31] : memref<1x128xf32, #tpu.memory_space<vmem>>, vector<1x128xf32>
    %136 = vector.broadcast %135 : vector<1x128xf32> to vector<6x128xf32>
    %137 = arith.addf %134, %136 : vector<6x128xf32>
    %cst_32 = arith.constant dense<0xFF800000> : vector<6xf32>
    %138 = vector.multi_reduction <maximumf>, %137, %cst_32 [1] : vector<6x128xf32> to vector<6xf32>
    %139 = vector.shape_cast %138 : vector<6xf32> to vector<6x1xf32>
    %140 = vector.broadcast %139 : vector<6x1xf32> to vector<6x128xf32>
    %141 = arith.subf %137, %140 : vector<6x128xf32>
    %142 = math.exp %141 : vector<6x128xf32>
    %cst_33 = arith.constant dense<0.000000e+00> : vector<6xf32>
    %143 = vector.multi_reduction <add>, %142, %cst_33 [1] : vector<6x128xf32> to vector<6xf32>
    %144 = vector.shape_cast %143 : vector<6xf32> to vector<6x1xf32>
    %145 = math.log %144 : vector<6x1xf32>
    %146 = arith.addf %145, %139 : vector<6x1xf32>
    %147 = vector.broadcast %146 : vector<6x1xf32> to vector<6x128xf32>
    %148 = arith.subf %137, %147 : vector<6x128xf32>
    %c0_34 = arith.constant 0 : index
    %c0_35 = arith.constant 0 : index
    %149 = vector.load %arg8[%c0_34, %c0_35] : memref<6x128xf32, #tpu.memory_space<vmem>>, vector<6x128xf32>
    tpu.vector_store %arg8[%c0_34, %c0_35], %148 {strides = array<i32>} : memref<6x128xf32, #tpu.memory_space<vmem>>, vector<6x128xf32>,
    return
  }
}

</mosaic_0001>

<llo_original>
// kernel: lstm_forward.1
$region0: #{lstm_forward.1}
  #allocation0 [shape = 'u32[]', space=smem, size = 0x4, offset = 0x4, fixed_abs, tag = 'smem constant byte address 0x4 - core index']
  #allocation1 [shape = 'u32[72,128]{1,0:T(1,128)}', space=vmem, size = 0x9000, scoped, tag = 'internal scratch']
  %s0 = inlined_call_operand.vmem [shape: bf16[6,55], index: 0, kind: input, shape index: {}]
  %s1 = inlined_call_operand.vmem [shape: f32[1,128], index: 1, kind: input, shape index: {}]
  %s2 = inlined_call_operand.vmem [shape: f32[1,128], index: 2, kind: input, shape index: {}]
  %s3 = inlined_call_operand.hbm [shape: bf16[55,512], index: 3, kind: input, shape index: {}]
  %s4 = inlined_call_operand.hbm [shape: bf16[128,512], index: 4, kind: input, shape index: {}]
  %s5 = inlined_call_operand.vmem [shape: f32[1,512], index: 5, kind: input, shape index: {}]
  %s6 = inlined_call_operand.hbm [shape: bf16[128,128], index: 6, kind: input, shape index: {}]
  %s7 = inlined_call_operand.vmem [shape: f32[1,128], index: 7, kind: input, shape index: {}]
  %s8 = inlined_call_operand.vmem [shape: f32[6,128], index: 8, kind: output, shape index: {0}]
  %s9 = inlined_call_operand.vmem [shape: f32[1,128], index: 9, kind: output, shape index: {1}]
  %s10 = inlined_call_operand.vmem [shape: f32[1,128], index: 10, kind: output, shape index: {2}]
  %11 = xla_tuple %s8, %s9, %s10
  %s12 = sld [smem:[#allocation0]]
  $region70: #{lstm_forward.1} parent=0
    _
  %s14 = ssub.s32 1, %s12
  %s15 = scalar_select 0, %s14, %s12
  $region1: #{lstm_forward.1} parent=0
    #allocation2 [shape = 'u8[57344]{0}', space=vmem, size = 0xe000, scoped, tag = 'input window, operand 3, single buffered']
    #allocation3 [shape = 's32[1]{0}', space=sflag, size = 0x4, scoped, tag = 'scoped memory for lstm_forward.1']
    #allocation4 [shape = 'u8[131072]{0}', space=vmem, size = 0x20000, scoped, tag = 'input window, operand 4, single buffered']
    #allocation5 [shape = 's32[1]{0}', space=sflag, size = 0x4, scoped, tag = 'scoped memory for lstm_forward.1']
    #allocation6 [shape = 'u8[32768]{0}', space=vmem, size = 0x8000, scoped, tag = 'input window, operand 6, single buffered']
    %16 = vsyncpa [#allocation3], 0
    %17 = vsyncpa [#allocation5], 0
    // Predicated region
    $region2: #{lstm_forward.1} parent=1 // pred_check
      _
    $region3: #{lstm_forward.1} parent=1 // pred_check_branch
      %19 = sbr.rel (0) target = $region5
    $region4: #{lstm_forward.1} parent=1 // pred_region
      _
    $region5: #{lstm_forward.1} parent=1 // pred_fallthru
      _
    // Predicated region
    $region6: #{lstm_forward.1} parent=1 // pred_check
      _
    $region7: #{lstm_forward.1} parent=1 // pred_check_branch
      %21 = sbr.rel (0) target = $region9
    $region8: #{lstm_forward.1} parent=1 // pred_region
      _
    $region9: #{lstm_forward.1} parent=1 // pred_fallthru
      _
    // Predicated region
    $region10: #{lstm_forward.1} parent=1 // pred_check
      _
    $region11: #{lstm_forward.1} parent=1 // pred_check_branch
      %23 = sbr.rel (0) target = $region13
    $region12: #{lstm_forward.1} parent=1 // pred_region
      _
    $region13: #{lstm_forward.1} parent=1 // pred_fallthru
      _
    // Predicated region
    $region14: #{lstm_forward.1} parent=1 // pred_check
      _
    $region15: #{lstm_forward.1} parent=1 // pred_check_branch
      %25 = sbr.rel (0) target = $region17
    $region16: #{lstm_forward.1} parent=1 // pred_region
      %27 = vsyncadd [#allocation3], 0
      %s28 = sshll.u32 %s3, 4
      %s29 = int_to_ptr.hbm [resolvable:$true] %s28
      %s30 = sshll.u32 [#allocation2], 4
      %s31 = int_to_ptr.vmem [resolvable:$true] %s30
      %36 = dma.hbm_to_vmem [thread:$0]  %s29, 1792, %s31, [#allocation3], 256, 256, 16
    $region17: #{lstm_forward.1} parent=1 // pred_fallthru
      _
    // Predicated region
    $region18: #{lstm_forward.1} parent=1 // pred_check
      _
    $region19: #{lstm_forward.1} parent=1 // pred_check_branch
      %38 = sbr.rel (0) target = $region21
    $region20: #{lstm_forward.1} parent=1 // pred_region
      %40 = vsyncadd [#allocation5], 0
      %s41 = sshll.u32 %s4, 4
      %s42 = int_to_ptr.hbm [resolvable:$true] %s41
      %s43 = sshll.u32 [#allocation4], 4
      %s44 = int_to_ptr.vmem [resolvable:$true] %s43
      %49 = dma.hbm_to_vmem [thread:$0]  %s42, 4096, %s44, [#allocation5], 256, 256, 16
    $region21: #{lstm_forward.1} parent=1 // pred_fallthru
      _
    // Predicated region
    $region22: #{lstm_forward.1} parent=1 // pred_check
      _
    $region23: #{lstm_forward.1} parent=1 // pred_check_branch
      %51 = sbr.rel (0) target = $region25
    $region24: #{lstm_forward.1} parent=1 // pred_region
      _
    $region25: #{lstm_forward.1} parent=1 // pred_fallthru
      _
    // Predicated region
    $region26: #{lstm_forward.1} parent=1 // pred_check
      _
    $region27: #{lstm_forward.1} parent=1 // pred_check_branch
      %53 = sbr.rel (0) target = $region29
    $region28: #{lstm_forward.1} parent=1 // pred_region
      %55 = vsyncadd [#allocation5], 0
      %s56 = sshll.u32 %s6, 4
      %s57 = int_to_ptr.hbm [resolvable:$true] %s56
      %s58 = sshll.u32 [#allocation6], 4
      %s59 = int_to_ptr.vmem [resolvable:$true] %s58
      %64 = dma.hbm_to_vmem [thread:$0]  %s57, 1024, %s59, [#allocation5], 64, 64, 4
    $region29: #{lstm_forward.1} parent=1 // pred_fallthru
      _
    // Predicated region
    $region30: #{lstm_forward.1} parent=1 // pred_check
      _
    $region31: #{lstm_forward.1} parent=1 // pred_check_branch
      %66 = sbr.rel (0) target = $region33
    $region32: #{lstm_forward.1} parent=1 // pred_region
      _
    $region33: #{lstm_forward.1} parent=1 // pred_fallthru
      _
    // Predicated region
    $region34: #{lstm_forward.1} parent=1 // pred_check
      _
    $region35: #{lstm_forward.1} parent=1 // pred_check_branch
      %68 = sbr.rel (0) target = $region37
    $region36: #{lstm_forward.1} parent=1 // pred_region
      %70 = dma.done [#allocation3], 1792
    $region37: #{lstm_forward.1} parent=1 // pred_fallthru
      _
    // Predicated region
    $region38: #{lstm_forward.1} parent=1 // pred_check
      _
    $region39: #{lstm_forward.1} parent=1 // pred_check_branch
      %72 = sbr.rel (0) target = $region41
    $region40: #{lstm_forward.1} parent=1 // pred_region
      %74 = dma.done [#allocation5], 4096
    $region41: #{lstm_forward.1} parent=1 // pred_fallthru
      _
    // Predicated region
    $region42: #{lstm_forward.1} parent=1 // pred_check
      _
    $region43: #{lstm_forward.1} parent=1 // pred_check_branch
      %76 = sbr.rel (0) target = $region45
    $region44: #{lstm_forward.1} parent=1 // pred_region
      %78 = dma.done [#allocation5], 1024
    $region45: #{lstm_forward.1} parent=1 // pred_fallthru
      _
    %v80 = vld [vmem:[%s0] sm:$0x7]
    %v81 = vld [vmem:[#allocation2] sm:$0xff]
    %v82 = vld [vmem:[#allocation2 + $0x8] sm:$0xff]
    %v83 = vld [vmem:[#allocation2 + $0x10] sm:$0xff]
    %v84 = vld [vmem:[#allocation2 + $0x18] sm:$0xff]
    %v85 = vld [vmem:[#allocation2 + $0x20] sm:$0xff]
    %v86 = vld [vmem:[#allocation2 + $0x28] sm:$0xff]
    %v87 = vld [vmem:[#allocation2 + $0x30] sm:$0xff]
    %v88 = vld [vmem:[#allocation2 + $0x38] sm:$0xff]
    %v89 = vld [vmem:[#allocation2 + $0x40] sm:$0xff]
    %v90 = vld [vmem:[#allocation2 + $0x48] sm:$0xff]
    %v91 = vld [vmem:[#allocation2 + $0x50] sm:$0xff]
    %v92 = vld [vmem:[#allocation2 + $0x58] sm:$0xff]
    %v93 = vld [vmem:[#allocation2 + $0x60] sm:$0xff]
    %v94 = vld [vmem:[#allocation2 + $0x68] sm:$0xff]
    %v95 = vld [vmem:[%s5] sm:$0xf]
    %v97 = vperm.slane %v95, 0
    %v98 = vperm.slane %v95, 1
    %v99 = vperm.slane %v95, 2
    %v100 = vperm.slane %v95, 3
    %v119 = vunpack.c.l.b16 %v81
    %v120 = vunpack.c.h.b16 %v81
    %v121 = vunpack.c.l.b16 %v82
    %v122 = vunpack.c.h.b16 %v82
    %v123 = vunpack.c.l.b16 %v83
    %v124 = vunpack.c.h.b16 %v83
    %v125 = vunpack.c.l.b16 %v84
    %v126 = vunpack.c.h.b16 %v84
    %v127 = vunpack.c.l.b16 %v85
    %v128 = vunpack.c.h.b16 %v85
    %v129 = vunpack.c.l.b16 %v86
    %v130 = vunpack.c.h.b16 %v86
    %v131 = vunpack.c.l.b16 %v87
    %v132 = vunpack.c.h.b16 %v87
    %v133 = vunpack.c.l.b16 %v88
    %v134 = vunpack.c.h.b16 %v88
    %v135 = vunpack.c.l.b16 %v89
    %v136 = vunpack.c.h.b16 %v89
    %v137 = vunpack.c.l.b16 %v90
    %v138 = vunpack.c.h.b16 %v90
    %v139 = vunpack.c.l.b16 %v91
    %v140 = vunpack.c.h.b16 %v91
    %v141 = vunpack.c.l.b16 %v92
    %v142 = vunpack.c.h.b16 %v92
    %v143 = vunpack.c.l.b16 %v93
    %v144 = vunpack.c.h.b16 %v93
    %v145 = vunpack.c.l.b16 %v94
    %v146 = vunpack.c.h.b16 %v94
    %v147 = vpack.c.b16 %v123, %v119
    %v148 = vpack.c.b16 %v124, %v120
    %v149 = vpack.c.b16 %v125, %v121
    %v150 = vpack.c.b16 %v126, %v122
    %v151 = vpack.c.b16 %v131, %v127
    %v152 = vpack.c.b16 %v132, %v128
    %v153 = vpack.c.b16 %v133, %v129
    %v154 = vpack.c.b16 %v134, %v130
    %v155 = vpack.c.b16 %v139, %v135
    %v156 = vpack.c.b16 %v140, %v136
    %v157 = vpack.c.b16 %v141, %v137
    %v158 = vpack.c.b16 %v142, %v138
    %v159 = vpack.c.b16 %v143, %v143
    %v160 = vpack.c.b16 %v144, %v144
    %v161 = vpack.c.b16 %v145, %v145
    %v162 = vpack.c.b16 %v146, %v146
    %vm175 = vcmask 449536
    %v177 = vsel %vm175, %v80, 0
    %vm179 = vcmask 1042432
    %vm180 = vcmask 1043456
    %v181 = vsel %vm179, 4294967295, 65535
    %v182 = vsel %vm180, %v181, 0
    %v184 = vand.u32 %v159, %v182
    %v187 = vand.u32 %v160, %v182
    %v190 = vand.u32 %v161, %v182
    %v193 = vand.u32 %v162, %v182
    %195 = vmatpush.bf16.msra.mxu0 0
    %196 = vmatpush.bf16.msra.mxu0 0
    %197 = vmatpush.bf16.msra.mxu0 0
    %198 = vmatpush.bf16.msra.mxu0 0
    %199 = vmatpush.bf16.msra.mxu0 %v184
    %200 = vmatpush.bf16.msra.mxu0 %v155
    %201 = vmatpush.bf16.msra.mxu0 %v151
    %202 = vmatpush.bf16.msra.mxu0 %v147
    %203 = vmatmul.bf16.gmra.mxu0 %v177
    %v204 = vpop.f32.mrf.mxu0
    %v205 = vadd.f32 %v97, %v204
    %v206 = vpop.f32.mrf.mxu0
    %207 = vdwg.mxu0
    %208 = vmatpush.bf16.msra.mxu0 0
    %209 = vmatpush.bf16.msra.mxu0 0
    %210 = vmatpush.bf16.msra.mxu0 0
    %211 = vmatpush.bf16.msra.mxu0 0
    %212 = vmatpush.bf16.msra.mxu0 %v187
    %213 = vmatpush.bf16.msra.mxu0 %v156
    %214 = vmatpush.bf16.msra.mxu0 %v152
    %215 = vmatpush.bf16.msra.mxu0 %v148
    %216 = vmatmul.bf16.gmra.mxu0 %v177
    %v217 = vpop.f32.mrf.mxu0
    %v218 = vadd.f32 %v98, %v217
    %v219 = vpop.f32.mrf.mxu0
    %220 = vdwg.mxu0
    %221 = vmatpush.bf16.msra.mxu0 0
    %222 = vmatpush.bf16.msra.mxu0 0
    %223 = vmatpush.bf16.msra.mxu0 0
    %224 = vmatpush.bf16.msra.mxu0 0
    %225 = vmatpush.bf16.msra.mxu0 %v190
    %226 = vmatpush.bf16.msra.mxu0 %v157
    %227 = vmatpush.bf16.msra.mxu0 %v153
    %228 = vmatpush.bf16.msra.mxu0 %v149
    %229 = vmatmul.bf16.gmra.mxu0 %v177
    %v230 = vpop.f32.mrf.mxu0
    %v231 = vadd.f32 %v99, %v230
    %v232 = vpop.f32.mrf.mxu0
    %233 = vdwg.mxu0
    %234 = vmatpush.bf16.msra.mxu0 0
    %235 = vmatpush.bf16.msra.mxu0 0
    %236 = vmatpush.bf16.msra.mxu0 0
    %237 = vmatpush.bf16.msra.mxu0 0
    %238 = vmatpush.bf16.msra.mxu0 %v193
    %239 = vmatpush.bf16.msra.mxu0 %v158
    %240 = vmatpush.bf16.msra.mxu0 %v154
    %241 = vmatpush.bf16.msra.mxu0 %v150
    %242 = vmatmul.bf16.gmra.mxu0 %v177
    %v243 = vpop.f32.mrf.mxu0
    %v244 = vadd.f32 %v100, %v243
    %v245 = vpop.f32.mrf.mxu0
    %246 = vdwg.mxu0
    %v247 = vld [vmem:[#allocation4] sm:$0xff]
    %v248 = vld [vmem:[#allocation4 + $0x8] sm:$0xff]
    %v249 = vld [vmem:[#allocation4 + $0x10] sm:$0xff]
    %v250 = vld [vmem:[#allocation4 + $0x18] sm:$0xff]
    %v251 = vld [vmem:[#allocation4 + $0x20] sm:$0xff]
    %v252 = vld [vmem:[#allocation4 + $0x28] sm:$0xff]
    %v253 = vld [vmem:[#allocation4 + $0x30] sm:$0xff]
    %v254 = vld [vmem:[#allocation4 + $0x38] sm:$0xff]
    %v255 = vld [vmem:[#allocation4 + $0x40] sm:$0xff]
    %v256 = vld [vmem:[#allocation4 + $0x48] sm:$0xff]
    %v257 = vld [vmem:[#allocation4 + $0x50] sm:$0xff]
    %v258 = vld [vmem:[#allocation4 + $0x58] sm:$0xff]
    %v259 = vld [vmem:[#allocation4 + $0x60] sm:$0xff]
    %v260 = vld [vmem:[#allocation4 + $0x68] sm:$0xff]
    %v261 = vld [vmem:[#allocation4 + $0x70] sm:$0xff]
    %v262 = vld [vmem:[#allocation4 + $0x78] sm:$0xff]
    %v263 = vld [vmem:[#allocation4 + $0x80] sm:$0xff]
    %v264 = vld [vmem:[#allocation4 + $0x88] sm:$0xff]
    %v265 = vld [vmem:[#allocation4 + $0x90] sm:$0xff]
    %v266 = vld [vmem:[#allocation4 + $0x98] sm:$0xff]
    %v267 = vld [vmem:[#allocation4 + $0xa0] sm:$0xff]
    %v268 = vld [vmem:[#allocation4 + $0xa8] sm:$0xff]
    %v269 = vld [vmem:[#allocation4 + $0xb0] sm:$0xff]
    %v270 = vld [vmem:[#allocation4 + $0xb8] sm:$0xff]
    %v271 = vld [vmem:[#allocation4 + $0xc0] sm:$0xff]
    %v272 = vld [vmem:[#allocation4 + $0xc8] sm:$0xff]
    %v273 = vld [vmem:[#allocation4 + $0xd0] sm:$0xff]
    %v274 = vld [vmem:[#allocation4 + $0xd8] sm:$0xff]
    %v275 = vld [vmem:[#allocation4 + $0xe0] sm:$0xff]
    %v276 = vld [vmem:[#allocation4 + $0xe8] sm:$0xff]
    %v277 = vld [vmem:[#allocation4 + $0xf0] sm:$0xff]
    %v278 = vld [vmem:[#allocation4 + $0xf8] sm:$0xff]
    %v279 = vld [vmem:[%s1] sm:$0x1]
    %v280 = vld [vmem:[%s2] sm:$0x1]
    %v281 = vpack.c.bf16 %v279, %v279
    %v314 = vunpack.c.l.b16 %v247
    %v315 = vunpack.c.h.b16 %v247
    %v316 = vunpack.c.l.b16 %v248
    %v317 = vunpack.c.h.b16 %v248
    %v318 = vunpack.c.l.b16 %v249
    %v319 = vunpack.c.h.b16 %v249
    %v320 = vunpack.c.l.b16 %v250
    %v321 = vunpack.c.h.b16 %v250
    %v322 = vunpack.c.l.b16 %v251
    %v323 = vunpack.c.h.b16 %v251
    %v324 = vunpack.c.l.b16 %v252
    %v325 = vunpack.c.h.b16 %v252
    %v326 = vunpack.c.l.b16 %v253
    %v327 = vunpack.c.h.b16 %v253
    %v328 = vunpack.c.l.b16 %v254
    %v329 = vunpack.c.h.b16 %v254
    %v330 = vunpack.c.l.b16 %v255
    %v331 = vunpack.c.h.b16 %v255
    %v332 = vunpack.c.l.b16 %v256
    %v333 = vunpack.c.h.b16 %v256
    %v334 = vunpack.c.l.b16 %v257
    %v335 = vunpack.c.h.b16 %v257
    %v336 = vunpack.c.l.b16 %v258
    %v337 = vunpack.c.h.b16 %v258
    %v338 = vunpack.c.l.b16 %v259
    %v339 = vunpack.c.h.b16 %v259
    %v340 = vunpack.c.l.b16 %v260
    %v341 = vunpack.c.h.b16 %v260
    %v342 = vunpack.c.l.b16 %v261
    %v343 = vunpack.c.h.b16 %v261
    %v344 = vunpack.c.l.b16 %v262
    %v345 = vunpack.c.h.b16 %v262
    %v346 = vunpack.c.l.b16 %v263
    %v347 = vunpack.c.h.b16 %v263
    %v348 = vunpack.c.l.b16 %v264
    %v349 = vunpack.c.h.b16 %v264
    %v350 = vunpack.c.l.b16 %v265
    %v351 = vunpack.c.h.b16 %v265
    %v352 = vunpack.c.l.b16 %v266
    %v353 = vunpack.c.h.b16 %v266
    %v354 = vunpack.c.l.b16 %v267
    %v355 = vunpack.c.h.b16 %v267
    %v356 = vunpack.c.l.b16 %v268
    %v357 = vunpack.c.h.b16 %v268
    %v358 = vunpack.c.l.b16 %v269
    %v359 = vunpack.c.h.b16 %v269
    %v360 = vunpack.c.l.b16 %v270
    %v361 = vunpack.c.h.b16 %v270
    %v362 = vunpack.c.l.b16 %v271
    %v363 = vunpack.c.h.b16 %v271
    %v364 = vunpack.c.l.b16 %v272
    %v365 = vunpack.c.h.b16 %v272
    %v366 = vunpack.c.l.b16 %v273
    %v367 = vunpack.c.h.b16 %v273
    %v368 = vunpack.c.l.b16 %v274
    %v369 = vunpack.c.h.b16 %v274
    %v370 = vunpack.c.l.b16 %v275
    %v371 = vunpack.c.h.b16 %v275
    %v372 = vunpack.c.l.b16 %v276
    %v373 = vunpack.c.h.b16 %v276
    %v374 = vunpack.c.l.b16 %v277
    %v375 = vunpack.c.h.b16 %v277
    %v376 = vunpack.c.l.b16 %v278
    %v377 = vunpack.c.h.b16 %v278
    %v378 = vpack.c.b16 %v318, %v314
    %v379 = vpack.c.b16 %v319, %v315
    %v380 = vpack.c.b16 %v320, %v316
    %v381 = vpack.c.b16 %v321, %v317
    %v382 = vpack.c.b16 %v326, %v322
    %v383 = vpack.c.b16 %v327, %v323
    %v384 = vpack.c.b16 %v328, %v324
    %v385 = vpack.c.b16 %v329, %v325
    %v386 = vpack.c.b16 %v334, %v330
    %v387 = vpack.c.b16 %v335, %v331
    %v388 = vpack.c.b16 %v336, %v332
    %v389 = vpack.c.b16 %v337, %v333
    %v390 = vpack.c.b16 %v342, %v338
    %v391 = vpack.c.b16 %v343, %v339
    %v392 = vpack.c.b16 %v344, %v340
    %v393 = vpack.c.b16 %v345, %v341
    %v394 = vpack.c.b16 %v350, %v346
    %v395 = vpack.c.b16 %v351, %v347
    %v396 = vpack.c.b16 %v352, %v348
    %v397 = vpack.c.b16 %v353, %v349
    %v398 = vpack.c.b16 %v358, %v354
    %v399 = vpack.c.b16 %v359, %v355
    %v400 = vpack.c.b16 %v360, %v356
    %v401 = vpack.c.b16 %v361, %v357
    %v402 = vpack.c.b16 %v366, %v362
    %v403 = vpack.c.b16 %v367, %v363
    %v404 = vpack.c.b16 %v368, %v364
    %v405 = vpack.c.b16 %v369, %v365
    %v406 = vpack.c.b16 %v374, %v370
    %v407 = vpack.c.b16 %v375, %v371
    %v408 = vpack.c.b16 %v376, %v372
    %v409 = vpack.c.b16 %v377, %v373
    %442 = vmatpush.bf16.msra.mxu0 %v406
    %443 = vmatpush.bf16.msra.mxu0 %v402
    %444 = vmatpush.bf16.msra.mxu0 %v398
    %445 = vmatpush.bf16.msra.mxu0 %v394
    %446 = vmatpush.bf16.msra.mxu0 %v390
    %447 = vmatpush.bf16.msra.mxu0 %v386
    %448 = vmatpush.bf16.msra.mxu0 %v382
    %449 = vmatpush.bf16.msra.mxu0 %v378
    %450 = vmatmul.bf16.gmra.mxu0 %v281
    %v451 = vpop.f32.mrf.mxu0
    %v452 = vadd.f32 0.0, %v451
    %v453 = vpop.f32.mrf.mxu0
    %454 = vdwg.mxu0
    %455 = vmatpush.bf16.msra.mxu0 %v407
    %456 = vmatpush.bf16.msra.mxu0 %v403
    %457 = vmatpush.bf16.msra.mxu0 %v399
    %458 = vmatpush.bf16.msra.mxu0 %v395
    %459 = vmatpush.bf16.msra.mxu0 %v391
    %460 = vmatpush.bf16.msra.mxu0 %v387
    %461 = vmatpush.bf16.msra.mxu0 %v383
    %462 = vmatpush.bf16.msra.mxu0 %v379
    %463 = vmatmul.bf16.gmra.mxu0 %v281
    %v464 = vpop.f32.mrf.mxu0
    %v465 = vadd.f32 0.0, %v464
    %v466 = vpop.f32.mrf.mxu0
    %467 = vdwg.mxu0
    %468 = vmatpush.bf16.msra.mxu0 %v408
    %469 = vmatpush.bf16.msra.mxu0 %v404
    %470 = vmatpush.bf16.msra.mxu0 %v400
    %471 = vmatpush.bf16.msra.mxu0 %v396
    %472 = vmatpush.bf16.msra.mxu0 %v392
    %473 = vmatpush.bf16.msra.mxu0 %v388
    %474 = vmatpush.bf16.msra.mxu0 %v384
    %475 = vmatpush.bf16.msra.mxu0 %v380
    %476 = vmatmul.bf16.gmra.mxu0 %v281
    %v477 = vpop.f32.mrf.mxu0
    %v478 = vadd.f32 0.0, %v477
    %v479 = vpop.f32.mrf.mxu0
    %480 = vdwg.mxu0
    %481 = vmatpush.bf16.msra.mxu0 %v409
    %482 = vmatpush.bf16.msra.mxu0 %v405
    %483 = vmatpush.bf16.msra.mxu0 %v401
    %484 = vmatpush.bf16.msra.mxu0 %v397
    %485 = vmatpush.bf16.msra.mxu0 %v393
    %486 = vmatpush.bf16.msra.mxu0 %v389
    %487 = vmatpush.bf16.msra.mxu0 %v385
    %488 = vmatpush.bf16.msra.mxu0 %v381
    %489 = vmatmul.bf16.gmra.mxu0 %v281
    %v490 = vpop.f32.mrf.mxu0
    %v491 = vadd.f32 0.0, %v490
    %v492 = vpop.f32.mrf.mxu0
    %493 = vdwg.mxu0
    %v494 = vadd.f32 %v205, %v452
    %v495 = vadd.f32 %v218, %v465
    %v496 = vadd.f32 %v231, %v478
    %v497 = vadd.f32 %v244, %v491
    %v498 = vxor.u32 %v494, 2147483648
    %v499 = vxor.u32 %v495, 2147483648
    %v500 = vxor.u32 %v496, 2147483648
    %v501 = vmul.f32 %v498, 1.442695
    %v502 = vpow.pop %v501
    %v503 = vmul.f32 %v499, 1.442695
    %v504 = vpow.pop %v503
    %v505 = vmul.f32 %v500, 1.442695
    %v506 = vpow.pop %v505
    %v507 = vadd.f32 %v502, 1.0
    %v508 = vadd.f32 %v504, 1.0
    %v509 = vadd.f32 %v506, 1.0
    %v510 = vrcp.pop %v507
    %v511 = vmul.f32 %v507, %v510
    %v512 = vsub.f32 1.0, %v511
    %v513 = vmul.f32 %v510, %v512
    %v514 = vadd.f32 %v510, %v513
    %vm515 = vweird.f32 %v507
    %vm516 = vweird.f32 %v510
    %vm517 = vmor %vm515, %vm516
    %v518 = vsel %vm517, %v510, %v514
    %v519 = vand.u32 2147483647, %v507
    %vm520 = vcmp.eq.f32.partialorder %v519, 8.507059e+37
    %v521 = vand.u32 %v507, 2147483648
    %v522 = vor.u32 1.1754944e-38, %v521
    %v523 = vsel %vm520, %v522, %v518
    %v524 = vmul.f32 1.0, %v523
    %v525 = vrcp.pop %v508
    %v526 = vmul.f32 %v508, %v525
    %v527 = vsub.f32 1.0, %v526
    %v528 = vmul.f32 %v525, %v527
    %v529 = vadd.f32 %v525, %v528
    %vm530 = vweird.f32 %v508
    %vm531 = vweird.f32 %v525
    %vm532 = vmor %vm530, %vm531
    %v533 = vsel %vm532, %v525, %v529
    %v534 = vand.u32 2147483647, %v508
    %vm535 = vcmp.eq.f32.partialorder %v534, 8.507059e+37
    %v536 = vand.u32 %v508, 2147483648
    %v537 = vor.u32 1.1754944e-38, %v536
    %v538 = vsel %vm535, %v537, %v533
    %v539 = vmul.f32 1.0, %v538
    %v540 = vrcp.pop %v509
    %v541 = vmul.f32 %v509, %v540
    %v542 = vsub.f32 1.0, %v541
    %v543 = vmul.f32 %v540, %v542
    %v544 = vadd.f32 %v540, %v543
    %vm545 = vweird.f32 %v509
    %vm546 = vweird.f32 %v540
    %vm547 = vmor %vm545, %vm546
    %v548 = vsel %vm547, %v540, %v544
    %v549 = vand.u32 2147483647, %v509
    %vm550 = vcmp.eq.f32.partialorder %v549, 8.507059e+37
    %v551 = vand.u32 %v509, 2147483648
    %v552 = vor.u32 1.1754944e-38, %v551
    %v553 = vsel %vm550, %v552, %v548
    %v554 = vmul.f32 1.0, %v553
    %v555 = vtanh.pop %v497
    %v556 = vmul.f32 %v539, %v280
    %v557 = vmul.f32 %v524, %v555
    %v558 = vadd.f32 %v556, %v557
    %v559 = vtanh.pop %v558
    %v560 = vmul.f32 %v554, %v559
    %v561 = vpack.c.bf16 %v560, %v560
    %562 = vmatpush.bf16.msra.mxu0 %v406
    %563 = vmatpush.bf16.msra.mxu0 %v402
    %564 = vmatpush.bf16.msra.mxu0 %v398
    %565 = vmatpush.bf16.msra.mxu0 %v394
    %566 = vmatpush.bf16.msra.mxu0 %v390
    %567 = vmatpush.bf16.msra.mxu0 %v386
    %568 = vmatpush.bf16.msra.mxu0 %v382
    %569 = vmatpush.bf16.msra.mxu0 %v378
    %570 = vmatmul.bf16.gmra.mxu0 %v561
    %v571 = vpop.f32.mrf.mxu0
    %v572 = vadd.f32 0.0, %v571
    %v573 = vpop.f32.mrf.mxu0
    %574 = vdwg.mxu0
    %575 = vmatpush.bf16.msra.mxu0 %v407
    %576 = vmatpush.bf16.msra.mxu0 %v403
    %577 = vmatpush.bf16.msra.mxu0 %v399
    %578 = vmatpush.bf16.msra.mxu0 %v395
    %579 = vmatpush.bf16.msra.mxu0 %v391
    %580 = vmatpush.bf16.msra.mxu0 %v387
    %581 = vmatpush.bf16.msra.mxu0 %v383
    %582 = vmatpush.bf16.msra.mxu0 %v379
    %583 = vmatmul.bf16.gmra.mxu0 %v561
    %v584 = vpop.f32.mrf.mxu0
    %v585 = vadd.f32 0.0, %v584
    %v586 = vpop.f32.mrf.mxu0
    %587 = vdwg.mxu0
    %588 = vmatpush.bf16.msra.mxu0 %v408
    %589 = vmatpush.bf16.msra.mxu0 %v404
    %590 = vmatpush.bf16.msra.mxu0 %v400
    %591 = vmatpush.bf16.msra.mxu0 %v396
    %592 = vmatpush.bf16.msra.mxu0 %v392
    %593 = vmatpush.bf16.msra.mxu0 %v388
    %594 = vmatpush.bf16.msra.mxu0 %v384
    %595 = vmatpush.bf16.msra.mxu0 %v380
    %596 = vmatmul.bf16.gmra.mxu0 %v561
    %v597 = vpop.f32.mrf.mxu0
    %v598 = vadd.f32 0.0, %v597
    %v599 = vpop.f32.mrf.mxu0
    %600 = vdwg.mxu0
    %601 = vmatpush.bf16.msra.mxu0 %v409
    %602 = vmatpush.bf16.msra.mxu0 %v405
    %603 = vmatpush.bf16.msra.mxu0 %v401
    %604 = vmatpush.bf16.msra.mxu0 %v397
    %605 = vmatpush.bf16.msra.mxu0 %v393
    %606 = vmatpush.bf16.msra.mxu0 %v389
    %607 = vmatpush.bf16.msra.mxu0 %v385
    %608 = vmatpush.bf16.msra.mxu0 %v381
    %609 = vmatmul.bf16.gmra.mxu0 %v561
    %v610 = vpop.f32.mrf.mxu0
    %v611 = vadd.f32 0.0, %v610
    %v612 = vpop.f32.mrf.mxu0
    %613 = vdwg.mxu0
    %v618 = vrot.slane %v572, 7
    %v619 = vrot.slane %v585, 7
    %v620 = vrot.slane %v598, 7
    %v621 = vrot.slane %v611, 7
    %v626 = vadd.f32 %v205, %v618
    %v627 = vadd.f32 %v218, %v619
    %v628 = vadd.f32 %v231, %v620
    %v629 = vadd.f32 %v244, %v621
    %v630 = vxor.u32 %v626, 2147483648
    %v631 = vxor.u32 %v627, 2147483648
    %v632 = vxor.u32 %v628, 2147483648
    %v633 = vmul.f32 %v630, 1.442695
    %v634 = vpow.pop %v633
    %v635 = vmul.f32 %v631, 1.442695
    %v636 = vpow.pop %v635
    %v637 = vmul.f32 %v632, 1.442695
    %v638 = vpow.pop %v637
    %v639 = vadd.f32 %v634, 1.0
    %v640 = vadd.f32 %v636, 1.0
    %v641 = vadd.f32 %v638, 1.0
    %v642 = vrcp.pop %v639
    %v643 = vmul.f32 %v639, %v642
    %v644 = vsub.f32 1.0, %v643
    %v645 = vmul.f32 %v642, %v644
    %v646 = vadd.f32 %v642, %v645
    %vm647 = vweird.f32 %v639
    %vm648 = vweird.f32 %v642
    %vm649 = vmor %vm647, %vm648
    %v650 = vsel %vm649, %v642, %v646
    %v651 = vand.u32 2147483647, %v639
    %vm652 = vcmp.eq.f32.partialorder %v651, 8.507059e+37
    %v653 = vand.u32 %v639, 2147483648
    %v654 = vor.u32 1.1754944e-38, %v653
    %v655 = vsel %vm652, %v654, %v650
    %v656 = vmul.f32 1.0, %v655
    %v657 = vrcp.pop %v640
    %v658 = vmul.f32 %v640, %v657
    %v659 = vsub.f32 1.0, %v658
    %v660 = vmul.f32 %v657, %v659
    %v661 = vadd.f32 %v657, %v660
    %vm662 = vweird.f32 %v640
    %vm663 = vweird.f32 %v657
    %vm664 = vmor %vm662, %vm663
    %v665 = vsel %vm664, %v657, %v661
    %v666 = vand.u32 2147483647, %v640
    %vm667 = vcmp.eq.f32.partialorder %v666, 8.507059e+37
    %v668 = vand.u32 %v640, 2147483648
    %v669 = vor.u32 1.1754944e-38, %v668
    %v670 = vsel %vm667, %v669, %v665
    %v671 = vmul.f32 1.0, %v670
    %v672 = vrcp.pop %v641
    %v673 = vmul.f32 %v641, %v672
    %v674 = vsub.f32 1.0, %v673
    %v675 = vmul.f32 %v672, %v674
    %v676 = vadd.f32 %v672, %v675
    %vm677 = vweird.f32 %v641
    %vm678 = vweird.f32 %v672
    %vm679 = vmor %vm677, %vm678
    %v680 = vsel %vm679, %v672, %v676
    %v681 = vand.u32 2147483647, %v641
    %vm682 = vcmp.eq.f32.partialorder %v681, 8.507059e+37
    %v683 = vand.u32 %v641, 2147483648
    %v684 = vor.u32 1.1754944e-38, %v683
    %v685 = vsel %vm682, %v684, %v680
    %v686 = vmul.f32 1.0, %v685
    %v687 = vtanh.pop %v629
    %v689 = vrot.slane %v558, 7
    %v691 = vmul.f32 %v671, %v689
    %v692 = vmul.f32 %v656, %v687
    %v693 = vadd.f32 %v691, %v692
    %v694 = vtanh.pop %v693
    %v695 = vmul.f32 %v686, %v694
    %v696 = vpack.c.bf16 %v695, %v695
    %v698 = vshrl.u32 %v696, 16
    %701 = vmatpush.bf16.msra.mxu0 %v406
    %702 = vmatpush.bf16.msra.mxu0 %v402
    %703 = vmatpush.bf16.msra.mxu0 %v398
    %704 = vmatpush.bf16.msra.mxu0 %v394
    %705 = vmatpush.bf16.msra.mxu0 %v390
    %706 = vmatpush.bf16.msra.mxu0 %v386
    %707 = vmatpush.bf16.msra.mxu0 %v382
    %708 = vmatpush.bf16.msra.mxu0 %v378
    %709 = vmatmul.bf16.gmra.mxu0 %v698
    %v710 = vpop.f32.mrf.mxu0
    %v711 = vadd.f32 0.0, %v710
    %v712 = vpop.f32.mrf.mxu0
    %713 = vdwg.mxu0
    %714 = vmatpush.bf16.msra.mxu0 %v407
    %715 = vmatpush.bf16.msra.mxu0 %v403
    %716 = vmatpush.bf16.msra.mxu0 %v399
    %717 = vmatpush.bf16.msra.mxu0 %v395
    %718 = vmatpush.bf16.msra.mxu0 %v391
    %719 = vmatpush.bf16.msra.mxu0 %v387
    %720 = vmatpush.bf16.msra.mxu0 %v383
    %721 = vmatpush.bf16.msra.mxu0 %v379
    %722 = vmatmul.bf16.gmra.mxu0 %v698
    %v723 = vpop.f32.mrf.mxu0
    %v724 = vadd.f32 0.0, %v723
    %v725 = vpop.f32.mrf.mxu0
    %726 = vdwg.mxu0
    %727 = vmatpush.bf16.msra.mxu0 %v408
    %728 = vmatpush.bf16.msra.mxu0 %v404
    %729 = vmatpush.bf16.msra.mxu0 %v400
    %730 = vmatpush.bf16.msra.mxu0 %v396
    %731 = vmatpush.bf16.msra.mxu0 %v392
    %732 = vmatpush.bf16.msra.mxu0 %v388
    %733 = vmatpush.bf16.msra.mxu0 %v384
    %734 = vmatpush.bf16.msra.mxu0 %v380
    %735 = vmatmul.bf16.gmra.mxu0 %v698
    %v736 = vpop.f32.mrf.mxu0
    %v737 = vadd.f32 0.0, %v736
    %v738 = vpop.f32.mrf.mxu0
    %739 = vdwg.mxu0
    %740 = vmatpush.bf16.msra.mxu0 %v409
    %741 = vmatpush.bf16.msra.mxu0 %v405
    %742 = vmatpush.bf16.msra.mxu0 %v401
    %743 = vmatpush.bf16.msra.mxu0 %v397
    %744 = vmatpush.bf16.msra.mxu0 %v393
    %745 = vmatpush.bf16.msra.mxu0 %v389
    %746 = vmatpush.bf16.msra.mxu0 %v385
    %747 = vmatpush.bf16.msra.mxu0 %v381
    %748 = vmatmul.bf16.gmra.mxu0 %v698
    %v749 = vpop.f32.mrf.mxu0
    %v750 = vadd.f32 0.0, %v749
    %v751 = vpop.f32.mrf.mxu0
    %752 = vdwg.mxu0
    %v757 = vrot.slane %v711, 6
    %v758 = vrot.slane %v724, 6
    %v759 = vrot.slane %v737, 6
    %v760 = vrot.slane %v750, 6
    %v765 = vadd.f32 %v205, %v757
    %v766 = vadd.f32 %v218, %v758
    %v767 = vadd.f32 %v231, %v759
    %v768 = vadd.f32 %v244, %v760
    %v769 = vxor.u32 %v765, 2147483648
    %v770 = vxor.u32 %v766, 2147483648
    %v771 = vxor.u32 %v767, 2147483648
    %v772 = vmul.f32 %v769, 1.442695
    %v773 = vpow.pop %v772
    %v774 = vmul.f32 %v770, 1.442695
    %v775 = vpow.pop %v774
    %v776 = vmul.f32 %v771, 1.442695
    %v777 = vpow.pop %v776
    %v778 = vadd.f32 %v773, 1.0
    %v779 = vadd.f32 %v775, 1.0
    %v780 = vadd.f32 %v777, 1.0
    %v781 = vrcp.pop %v778
    %v782 = vmul.f32 %v778, %v781
    %v783 = vsub.f32 1.0, %v782
    %v784 = vmul.f32 %v781, %v783
    %v785 = vadd.f32 %v781, %v784
    %vm786 = vweird.f32 %v778
    %vm787 = vweird.f32 %v781
    %vm788 = vmor %vm786, %vm787
    %v789 = vsel %vm788, %v781, %v785
    %v790 = vand.u32 2147483647, %v778
    %vm791 = vcmp.eq.f32.partialorder %v790, 8.507059e+37
    %v792 = vand.u32 %v778, 2147483648
    %v793 = vor.u32 1.1754944e-38, %v792
    %v794 = vsel %vm791, %v793, %v789
    %v795 = vmul.f32 1.0, %v794
    %v796 = vrcp.pop %v779
    %v797 = vmul.f32 %v779, %v796
    %v798 = vsub.f32 1.0, %v797
    %v799 = vmul.f32 %v796, %v798
    %v800 = vadd.f32 %v796, %v799
    %vm801 = vweird.f32 %v779
    %vm802 = vweird.f32 %v796
    %vm803 = vmor %vm801, %vm802
    %v804 = vsel %vm803, %v796, %v800
    %v805 = vand.u32 2147483647, %v779
    %vm806 = vcmp.eq.f32.partialorder %v805, 8.507059e+37
    %v807 = vand.u32 %v779, 2147483648
    %v808 = vor.u32 1.1754944e-38, %v807
    %v809 = vsel %vm806, %v808, %v804
    %v810 = vmul.f32 1.0, %v809
    %v811 = vrcp.pop %v780
    %v812 = vmul.f32 %v780, %v811
    %v813 = vsub.f32 1.0, %v812
    %v814 = vmul.f32 %v811, %v813
    %v815 = vadd.f32 %v811, %v814
    %vm816 = vweird.f32 %v780
    %vm817 = vweird.f32 %v811
    %vm818 = vmor %vm816, %vm817
    %v819 = vsel %vm818, %v811, %v815
    %v820 = vand.u32 2147483647, %v780
    %vm821 = vcmp.eq.f32.partialorder %v820, 8.507059e+37
    %v822 = vand.u32 %v780, 2147483648
    %v823 = vor.u32 1.1754944e-38, %v822
    %v824 = vsel %vm821, %v823, %v819
    %v825 = vmul.f32 1.0, %v824
    %v826 = vtanh.pop %v768
    %v828 = vrot.slane %v693, 7
    %v830 = vmul.f32 %v810, %v828
    %v831 = vmul.f32 %v795, %v826
    %v832 = vadd.f32 %v830, %v831
    %v833 = vtanh.pop %v832
    %v834 = vmul.f32 %v825, %v833
    %v835 = vpack.c.bf16 %v834, %v834
    %v837 = vrot.slane %v835, 1
    %839 = vmatpush.bf16.msra.mxu0 %v406
    %840 = vmatpush.bf16.msra.mxu0 %v402
    %841 = vmatpush.bf16.msra.mxu0 %v398
    %842 = vmatpush.bf16.msra.mxu0 %v394
    %843 = vmatpush.bf16.msra.mxu0 %v390
    %844 = vmatpush.bf16.msra.mxu0 %v386
    %845 = vmatpush.bf16.msra.mxu0 %v382
    %846 = vmatpush.bf16.msra.mxu0 %v378
    %847 = vmatmul.bf16.gmra.mxu0 %v837
    %v848 = vpop.f32.mrf.mxu0
    %v849 = vadd.f32 0.0, %v848
    %v850 = vpop.f32.mrf.mxu0
    %851 = vdwg.mxu0
    %852 = vmatpush.bf16.msra.mxu0 %v407
    %853 = vmatpush.bf16.msra.mxu0 %v403
    %854 = vmatpush.bf16.msra.mxu0 %v399
    %855 = vmatpush.bf16.msra.mxu0 %v395
    %856 = vmatpush.bf16.msra.mxu0 %v391
    %857 = vmatpush.bf16.msra.mxu0 %v387
    %858 = vmatpush.bf16.msra.mxu0 %v383
    %859 = vmatpush.bf16.msra.mxu0 %v379
    %860 = vmatmul.bf16.gmra.mxu0 %v837
    %v861 = vpop.f32.mrf.mxu0
    %v862 = vadd.f32 0.0, %v861
    %v863 = vpop.f32.mrf.mxu0
    %864 = vdwg.mxu0
    %865 = vmatpush.bf16.msra.mxu0 %v408
    %866 = vmatpush.bf16.msra.mxu0 %v404
    %867 = vmatpush.bf16.msra.mxu0 %v400
    %868 = vmatpush.bf16.msra.mxu0 %v396
    %869 = vmatpush.bf16.msra.mxu0 %v392
    %870 = vmatpush.bf16.msra.mxu0 %v388
    %871 = vmatpush.bf16.msra.mxu0 %v384
    %872 = vmatpush.bf16.msra.mxu0 %v380
    %873 = vmatmul.bf16.gmra.mxu0 %v837
    %v874 = vpop.f32.mrf.mxu0
    %v875 = vadd.f32 0.0, %v874
    %v876 = vpop.f32.mrf.mxu0
    %877 = vdwg.mxu0
    %878 = vmatpush.bf16.msra.mxu0 %v409
    %879 = vmatpush.bf16.msra.mxu0 %v405
    %880 = vmatpush.bf16.msra.mxu0 %v401
    %881 = vmatpush.bf16.msra.mxu0 %v397
    %882 = vmatpush.bf16.msra.mxu0 %v393
    %883 = vmatpush.bf16.msra.mxu0 %v389
    %884 = vmatpush.bf16.msra.mxu0 %v385
    %885 = vmatpush.bf16.msra.mxu0 %v381
    %886 = vmatmul.bf16.gmra.mxu0 %v837
    %v887 = vpop.f32.mrf.mxu0
    %v888 = vadd.f32 0.0, %v887
    %v889 = vpop.f32.mrf.mxu0
    %890 = vdwg.mxu0
    %v895 = vrot.slane %v849, 5
    %v896 = vrot.slane %v862, 5
    %v897 = vrot.slane %v875, 5
    %v898 = vrot.slane %v888, 5
    %v903 = vadd.f32 %v205, %v895
    %v904 = vadd.f32 %v218, %v896
    %v905 = vadd.f32 %v231, %v897
    %v906 = vadd.f32 %v244, %v898
    %v907 = vxor.u32 %v903, 2147483648
    %v908 = vxor.u32 %v904, 2147483648
    %v909 = vxor.u32 %v905, 2147483648
    %v910 = vmul.f32 %v907, 1.442695
    %v911 = vpow.pop %v910
    %v912 = vmul.f32 %v908, 1.442695
    %v913 = vpow.pop %v912
    %v914 = vmul.f32 %v909, 1.442695
    %v915 = vpow.pop %v914
    %v916 = vadd.f32 %v911, 1.0
    %v917 = vadd.f32 %v913, 1.0
    %v918 = vadd.f32 %v915, 1.0
    %v919 = vrcp.pop %v916
    %v920 = vmul.f32 %v916, %v919
    %v921 = vsub.f32 1.0, %v920
    %v922 = vmul.f32 %v919, %v921
    %v923 = vadd.f32 %v919, %v922
    %vm924 = vweird.f32 %v916
    %vm925 = vweird.f32 %v919
    %vm926 = vmor %vm924, %vm925
    %v927 = vsel %vm926, %v919, %v923
    %v928 = vand.u32 2147483647, %v916
    %vm929 = vcmp.eq.f32.partialorder %v928, 8.507059e+37
    %v930 = vand.u32 %v916, 2147483648
    %v931 = vor.u32 1.1754944e-38, %v930
    %v932 = vsel %vm929, %v931, %v927
    %v933 = vmul.f32 1.0, %v932
    %v934 = vrcp.pop %v917
    %v935 = vmul.f32 %v917, %v934
    %v936 = vsub.f32 1.0, %v935
    %v937 = vmul.f32 %v934, %v936
    %v938 = vadd.f32 %v934, %v937
    %vm939 = vweird.f32 %v917
    %vm940 = vweird.f32 %v934
    %vm941 = vmor %vm939, %vm940
    %v942 = vsel %vm941, %v934, %v938
    %v943 = vand.u32 2147483647, %v917
    %vm944 = vcmp.eq.f32.partialorder %v943, 8.507059e+37
    %v945 = vand.u32 %v917, 2147483648
    %v946 = vor.u32 1.1754944e-38, %v945
    %v947 = vsel %vm944, %v946, %v942
    %v948 = vmul.f32 1.0, %v947
    %v949 = vrcp.pop %v918
    %v950 = vmul.f32 %v918, %v949
    %v951 = vsub.f32 1.0, %v950
    %v952 = vmul.f32 %v949, %v951
    %v953 = vadd.f32 %v949, %v952
    %vm954 = vweird.f32 %v918
    %vm955 = vweird.f32 %v949
    %vm956 = vmor %vm954, %vm955
    %v957 = vsel %vm956, %v949, %v953
    %v958 = vand.u32 2147483647, %v918
    %vm959 = vcmp.eq.f32.partialorder %v958, 8.507059e+37
    %v960 = vand.u32 %v918, 2147483648
    %v961 = vor.u32 1.1754944e-38, %v960
    %v962 = vsel %vm959, %v961, %v957
    %v963 = vmul.f32 1.0, %v962
    %v964 = vtanh.pop %v906
    %v966 = vrot.slane %v832, 7
    %v968 = vmul.f32 %v948, %v966
    %v969 = vmul.f32 %v933, %v964
    %v970 = vadd.f32 %v968, %v969
    %v971 = vtanh.pop %v970
    %v972 = vmul.f32 %v963, %v971
    %v973 = vpack.c.bf16 %v972, %v972
    %v975 = vshrl.u32 %v973, 16
    %v977 = vrot.slane %v975, 1
    %979 = vmatpush.bf16.msra.mxu0 %v406
    %980 = vmatpush.bf16.msra.mxu0 %v402
    %981 = vmatpush.bf16.msra.mxu0 %v398
    %982 = vmatpush.bf16.msra.mxu0 %v394
    %983 = vmatpush.bf16.msra.mxu0 %v390
    %984 = vmatpush.bf16.msra.mxu0 %v386
    %985 = vmatpush.bf16.msra.mxu0 %v382
    %986 = vmatpush.bf16.msra.mxu0 %v378
    %987 = vmatmul.bf16.gmra.mxu0 %v977
    %v988 = vpop.f32.mrf.mxu0
    %v989 = vadd.f32 0.0, %v988
    %v990 = vpop.f32.mrf.mxu0
    %991 = vdwg.mxu0
    %992 = vmatpush.bf16.msra.mxu0 %v407
    %993 = vmatpush.bf16.msra.mxu0 %v403
    %994 = vmatpush.bf16.msra.mxu0 %v399
    %995 = vmatpush.bf16.msra.mxu0 %v395
    %996 = vmatpush.bf16.msra.mxu0 %v391
    %997 = vmatpush.bf16.msra.mxu0 %v387
    %998 = vmatpush.bf16.msra.mxu0 %v383
    %999 = vmatpush.bf16.msra.mxu0 %v379
    %1000 = vmatmul.bf16.gmra.mxu0 %v977
    %v1001 = vpop.f32.mrf.mxu0
    %v1002 = vadd.f32 0.0, %v1001
    %v1003 = vpop.f32.mrf.mxu0
    %1004 = vdwg.mxu0
    %1005 = vmatpush.bf16.msra.mxu0 %v408
    %1006 = vmatpush.bf16.msra.mxu0 %v404
    %1007 = vmatpush.bf16.msra.mxu0 %v400
    %1008 = vmatpush.bf16.msra.mxu0 %v396
    %1009 = vmatpush.bf16.msra.mxu0 %v392
    %1010 = vmatpush.bf16.msra.mxu0 %v388
    %1011 = vmatpush.bf16.msra.mxu0 %v384
    %1012 = vmatpush.bf16.msra.mxu0 %v380
    %1013 = vmatmul.bf16.gmra.mxu0 %v977
    %v1014 = vpop.f32.mrf.mxu0
    %v1015 = vadd.f32 0.0, %v1014
    %v1016 = vpop.f32.mrf.mxu0
    %1017 = vdwg.mxu0
    %1018 = vmatpush.bf16.msra.mxu0 %v409
    %1019 = vmatpush.bf16.msra.mxu0 %v405
    %1020 = vmatpush.bf16.msra.mxu0 %v401
    %1021 = vmatpush.bf16.msra.mxu0 %v397
    %1022 = vmatpush.bf16.msra.mxu0 %v393
    %1023 = vmatpush.bf16.msra.mxu0 %v389
    %1024 = vmatpush.bf16.msra.mxu0 %v385
    %1025 = vmatpush.bf16.msra.mxu0 %v381
    %1026 = vmatmul.bf16.gmra.mxu0 %v977
    %v1027 = vpop.f32.mrf.mxu0
    %v1028 = vadd.f32 0.0, %v1027
    %v1029 = vpop.f32.mrf.mxu0
    %1030 = vdwg.mxu0
    %v1035 = vrot.slane %v989, 4
    %v1036 = vrot.slane %v1002, 4
    %v1037 = vrot.slane %v1015, 4
    %v1038 = vrot.slane %v1028, 4
    %v1043 = vadd.f32 %v205, %v1035
    %v1044 = vadd.f32 %v218, %v1036
    %v1045 = vadd.f32 %v231, %v1037
    %v1046 = vadd.f32 %v244, %v1038
    %v1047 = vxor.u32 %v1043, 2147483648
    %v1048 = vxor.u32 %v1044, 2147483648
    %v1049 = vxor.u32 %v1045, 2147483648
    %v1050 = vmul.f32 %v1047, 1.442695
    %v1051 = vpow.pop %v1050
    %v1052 = vmul.f32 %v1048, 1.442695
    %v1053 = vpow.pop %v1052
    %v1054 = vmul.f32 %v1049, 1.442695
    %v1055 = vpow.pop %v1054
    %v1056 = vadd.f32 %v1051, 1.0
    %v1057 = vadd.f32 %v1053, 1.0
    %v1058 = vadd.f32 %v1055, 1.0
    %v1059 = vrcp.pop %v1056
    %v1060 = vmul.f32 %v1056, %v1059
    %v1061 = vsub.f32 1.0, %v1060
    %v1062 = vmul.f32 %v1059, %v1061
    %v1063 = vadd.f32 %v1059, %v1062
    %vm1064 = vweird.f32 %v1056
    %vm1065 = vweird.f32 %v1059
    %vm1066 = vmor %vm1064, %vm1065
    %v1067 = vsel %vm1066, %v1059, %v1063
    %v1068 = vand.u32 2147483647, %v1056
    %vm1069 = vcmp.eq.f32.partialorder %v1068, 8.507059e+37
    %v1070 = vand.u32 %v1056, 2147483648
    %v1071 = vor.u32 1.1754944e-38, %v1070
    %v1072 = vsel %vm1069, %v1071, %v1067
    %v1073 = vmul.f32 1.0, %v1072
    %v1074 = vrcp.pop %v1057
    %v1075 = vmul.f32 %v1057, %v1074
    %v1076 = vsub.f32 1.0, %v1075
    %v1077 = vmul.f32 %v1074, %v1076
    %v1078 = vadd.f32 %v1074, %v1077
    %vm1079 = vweird.f32 %v1057
    %vm1080 = vweird.f32 %v1074
    %vm1081 = vmor %vm1079, %vm1080
    %v1082 = vsel %vm1081, %v1074, %v1078
    %v1083 = vand.u32 2147483647, %v1057
    %vm1084 = vcmp.eq.f32.partialorder %v1083, 8.507059e+37
    %v1085 = vand.u32 %v1057, 2147483648
    %v1086 = vor.u32 1.1754944e-38, %v1085
    %v1087 = vsel %vm1084, %v1086, %v1082
    %v1088 = vmul.f32 1.0, %v1087
    %v1089 = vrcp.pop %v1058
    %v1090 = vmul.f32 %v1058, %v1089
    %v1091 = vsub.f32 1.0, %v1090
    %v1092 = vmul.f32 %v1089, %v1091
    %v1093 = vadd.f32 %v1089, %v1092
    %vm1094 = vweird.f32 %v1058
    %vm1095 = vweird.f32 %v1089
    %vm1096 = vmor %vm1094, %vm1095
    %v1097 = vsel %vm1096, %v1089, %v1093
    %v1098 = vand.u32 2147483647, %v1058
    %vm1099 = vcmp.eq.f32.partialorder %v1098, 8.507059e+37
    %v1100 = vand.u32 %v1058, 2147483648
    %v1101 = vor.u32 1.1754944e-38, %v1100
    %v1102 = vsel %vm1099, %v1101, %v1097
    %v1103 = vmul.f32 1.0, %v1102
    %v1104 = vtanh.pop %v1046
    %v1106 = vrot.slane %v970, 7
    %v1108 = vmul.f32 %v1088, %v1106
    %v1109 = vmul.f32 %v1073, %v1104
    %v1110 = vadd.f32 %v1108, %v1109
    %v1111 = vtanh.pop %v1110
    %v1112 = vmul.f32 %v1103, %v1111
    %v1113 = vpack.c.bf16 %v1112, %v1112
    %v1115 = vrot.slane %v1113, 2
    %1117 = vmatpush.bf16.msra.mxu0 %v406
    %1118 = vmatpush.bf16.msra.mxu0 %v402
    %1119 = vmatpush.bf16.msra.mxu0 %v398
    %1120 = vmatpush.bf16.msra.mxu0 %v394
    %1121 = vmatpush.bf16.msra.mxu0 %v390
    %1122 = vmatpush.bf16.msra.mxu0 %v386
    %1123 = vmatpush.bf16.msra.mxu0 %v382
    %1124 = vmatpush.bf16.msra.mxu0 %v378
    %1125 = vmatmul.bf16.gmra.mxu0 %v1115
    %v1126 = vpop.f32.mrf.mxu0
    %v1127 = vadd.f32 0.0, %v1126
    %v1128 = vpop.f32.mrf.mxu0
    %1129 = vdwg.mxu0
    %1130 = vmatpush.bf16.msra.mxu0 %v407
    %1131 = vmatpush.bf16.msra.mxu0 %v403
    %1132 = vmatpush.bf16.msra.mxu0 %v399
    %1133 = vmatpush.bf16.msra.mxu0 %v395
    %1134 = vmatpush.bf16.msra.mxu0 %v391
    %1135 = vmatpush.bf16.msra.mxu0 %v387
    %1136 = vmatpush.bf16.msra.mxu0 %v383
    %1137 = vmatpush.bf16.msra.mxu0 %v379
    %1138 = vmatmul.bf16.gmra.mxu0 %v1115
    %v1139 = vpop.f32.mrf.mxu0
    %v1140 = vadd.f32 0.0, %v1139
    %v1141 = vpop.f32.mrf.mxu0
    %1142 = vdwg.mxu0
    %1143 = vmatpush.bf16.msra.mxu0 %v408
    %1144 = vmatpush.bf16.msra.mxu0 %v404
    %1145 = vmatpush.bf16.msra.mxu0 %v400
    %1146 = vmatpush.bf16.msra.mxu0 %v396
    %1147 = vmatpush.bf16.msra.mxu0 %v392
    %1148 = vmatpush.bf16.msra.mxu0 %v388
    %1149 = vmatpush.bf16.msra.mxu0 %v384
    %1150 = vmatpush.bf16.msra.mxu0 %v380
    %1151 = vmatmul.bf16.gmra.mxu0 %v1115
    %v1152 = vpop.f32.mrf.mxu0
    %v1153 = vadd.f32 0.0, %v1152
    %v1154 = vpop.f32.mrf.mxu0
    %1155 = vdwg.mxu0
    %1156 = vmatpush.bf16.msra.mxu0 %v409
    %1157 = vmatpush.bf16.msra.mxu0 %v405
    %1158 = vmatpush.bf16.msra.mxu0 %v401
    %1159 = vmatpush.bf16.msra.mxu0 %v397
    %1160 = vmatpush.bf16.msra.mxu0 %v393
    %1161 = vmatpush.bf16.msra.mxu0 %v389
    %1162 = vmatpush.bf16.msra.mxu0 %v385
    %1163 = vmatpush.bf16.msra.mxu0 %v381
    %1164 = vmatmul.bf16.gmra.mxu0 %v1115
    %v1165 = vpop.f32.mrf.mxu0
    %v1166 = vadd.f32 0.0, %v1165
    %v1167 = vpop.f32.mrf.mxu0
    %1168 = vdwg.mxu0
    %v1173 = vrot.slane %v1127, 3
    %v1174 = vrot.slane %v1140, 3
    %v1175 = vrot.slane %v1153, 3
    %v1176 = vrot.slane %v1166, 3
    %v1181 = vadd.f32 %v205, %v1173
    %v1182 = vadd.f32 %v218, %v1174
    %v1183 = vadd.f32 %v231, %v1175
    %v1184 = vadd.f32 %v244, %v1176
    %v1185 = vxor.u32 %v1181, 2147483648
    %v1186 = vxor.u32 %v1182, 2147483648
    %v1187 = vxor.u32 %v1183, 2147483648
    %v1188 = vmul.f32 %v1185, 1.442695
    %v1189 = vpow.pop %v1188
    %v1190 = vmul.f32 %v1186, 1.442695
    %v1191 = vpow.pop %v1190
    %v1192 = vmul.f32 %v1187, 1.442695
    %v1193 = vpow.pop %v1192
    %v1194 = vadd.f32 %v1189, 1.0
    %v1195 = vadd.f32 %v1191, 1.0
    %v1196 = vadd.f32 %v1193, 1.0
    %v1197 = vrcp.pop %v1194
    %v1198 = vmul.f32 %v1194, %v1197
    %v1199 = vsub.f32 1.0, %v1198
    %v1200 = vmul.f32 %v1197, %v1199
    %v1201 = vadd.f32 %v1197, %v1200
    %vm1202 = vweird.f32 %v1194
    %vm1203 = vweird.f32 %v1197
    %vm1204 = vmor %vm1202, %vm1203
    %v1205 = vsel %vm1204, %v1197, %v1201
    %v1206 = vand.u32 2147483647, %v1194
    %vm1207 = vcmp.eq.f32.partialorder %v1206, 8.507059e+37
    %v1208 = vand.u32 %v1194, 2147483648
    %v1209 = vor.u32 1.1754944e-38, %v1208
    %v1210 = vsel %vm1207, %v1209, %v1205
    %v1211 = vmul.f32 1.0, %v1210
    %v1212 = vrcp.pop %v1195
    %v1213 = vmul.f32 %v1195, %v1212
    %v1214 = vsub.f32 1.0, %v1213
    %v1215 = vmul.f32 %v1212, %v1214
    %v1216 = vadd.f32 %v1212, %v1215
    %vm1217 = vweird.f32 %v1195
    %vm1218 = vweird.f32 %v1212
    %vm1219 = vmor %vm1217, %vm1218
    %v1220 = vsel %vm1219, %v1212, %v1216
    %v1221 = vand.u32 2147483647, %v1195
    %vm1222 = vcmp.eq.f32.partialorder %v1221, 8.507059e+37
    %v1223 = vand.u32 %v1195, 2147483648
    %v1224 = vor.u32 1.1754944e-38, %v1223
    %v1225 = vsel %vm1222, %v1224, %v1220
    %v1226 = vmul.f32 1.0, %v1225
    %v1227 = vrcp.pop %v1196
    %v1228 = vmul.f32 %v1196, %v1227
    %v1229 = vsub.f32 1.0, %v1228
    %v1230 = vmul.f32 %v1227, %v1229
    %v1231 = vadd.f32 %v1227, %v1230
    %vm1232 = vweird.f32 %v1196
    %vm1233 = vweird.f32 %v1227
    %vm1234 = vmor %vm1232, %vm1233
    %v1235 = vsel %vm1234, %v1227, %v1231
    %v1236 = vand.u32 2147483647, %v1196
    %vm1237 = vcmp.eq.f32.partialorder %v1236, 8.507059e+37
    %v1238 = vand.u32 %v1196, 2147483648
    %v1239 = vor.u32 1.1754944e-38, %v1238
    %v1240 = vsel %vm1237, %v1239, %v1235
    %v1241 = vmul.f32 1.0, %v1240
    %v1242 = vtanh.pop %v1184
    %v1244 = vrot.slane %v1110, 7
    %v1246 = vmul.f32 %v1226, %v1244
    %v1247 = vmul.f32 %v1211, %v1242
    %v1248 = vadd.f32 %v1246, %v1247
    %v1249 = vtanh.pop %v1248
    %v1250 = vmul.f32 %v1241, %v1249
    %1251 = vst [vmem:[%s9 - $0x5] sm:$0x20] %v1250
    %1252 = vst [vmem:[%s10 - $0x5] sm:$0x20] %v1248
    %vm1253 = vcmask 1040384
    %v1254 = vsel %vm1253, %v560, %v695
    %vm1255 = vcmask 1041408
    %v1256 = vsel %vm1255, %v1254, %v834
    %v1257 = vsel %vm179, %v1256, %v972
    %v1258 = vsel %vm180, %v1257, %v1112
    %vm1259 = vcmask 1044480
    %v1260 = vsel %vm1259, %v1258, %v1250
    %v1261 = vpack.c.bf16 %v1260, %v1260
    %v1262 = vld [vmem:[#allocation6] sm:$0xf]
    %v1263 = vld [vmem:[#allocation6 + $0x4] sm:$0xf]
    %v1264 = vld [vmem:[#allocation6 + $0x8] sm:$0xf]
    %v1265 = vld [vmem:[#allocation6 + $0xc] sm:$0xf]
    %v1266 = vld [vmem:[#allocation6 + $0x10] sm:$0xf]
    %v1267 = vld [vmem:[#allocation6 + $0x14] sm:$0xf]
    %v1268 = vld [vmem:[#allocation6 + $0x18] sm:$0xf]
    %v1269 = vld [vmem:[#allocation6 + $0x1c] sm:$0xf]
    %v1270 = vld [vmem:[#allocation6 + $0x20] sm:$0xf]
    %v1271 = vld [vmem:[#allocation6 + $0x24] sm:$0xf]
    %v1272 = vld [vmem:[#allocation6 + $0x28] sm:$0xf]
    %v1273 = vld [vmem:[#allocation6 + $0x2c] sm:$0xf]
    %v1274 = vld [vmem:[#allocation6 + $0x30] sm:$0xf]
    %v1275 = vld [vmem:[#allocation6 + $0x34] sm:$0xf]
    %v1276 = vld [vmem:[#allocation6 + $0x38] sm:$0xf]
    %v1277 = vld [vmem:[#allocation6 + $0x3c] sm:$0xf]
    %v1278 = vld [vmem:[%s7] sm:$0x1]
    %v1280 = vperm.slane %v1278, 0
    %v1298 = vunpack.c.l.b16 %v1262
    %v1299 = vunpack.c.l.b16 %v1263
    %v1300 = vunpack.c.l.b16 %v1264
    %v1301 = vunpack.c.l.b16 %v1265
    %v1302 = vunpack.c.l.b16 %v1266
    %v1303 = vunpack.c.l.b16 %v1267
    %v1304 = vunpack.c.l.b16 %v1268
    %v1305 = vunpack.c.l.b16 %v1269
    %v1306 = vunpack.c.l.b16 %v1270
    %v1307 = vunpack.c.l.b16 %v1271
    %v1308 = vunpack.c.l.b16 %v1272
    %v1309 = vunpack.c.l.b16 %v1273
    %v1310 = vunpack.c.l.b16 %v1274
    %v1311 = vunpack.c.l.b16 %v1275
    %v1312 = vunpack.c.l.b16 %v1276
    %v1313 = vunpack.c.l.b16 %v1277
    %v1314 = vpack.c.b16 %v1299, %v1298
    %v1315 = vpack.c.b16 %v1301, %v1300
    %v1316 = vpack.c.b16 %v1303, %v1302
    %v1317 = vpack.c.b16 %v1305, %v1304
    %v1318 = vpack.c.b16 %v1307, %v1306
    %v1319 = vpack.c.b16 %v1309, %v1308
    %v1320 = vpack.c.b16 %v1311, %v1310
    %v1321 = vpack.c.b16 %v1313, %v1312
    %1330 = vmatpush.bf16.msra.mxu0 %v1321
    %1331 = vmatpush.bf16.msra.mxu0 %v1320
    %1332 = vmatpush.bf16.msra.mxu0 %v1319
    %1333 = vmatpush.bf16.msra.mxu0 %v1318
    %1334 = vmatpush.bf16.msra.mxu0 %v1317
    %1335 = vmatpush.bf16.msra.mxu0 %v1316
    %1336 = vmatpush.bf16.msra.mxu0 %v1315
    %1337 = vmatpush.bf16.msra.mxu0 %v1314
    %1338 = vmatmul.bf16.gmra.mxu0 %v1261
    %v1339 = vpop.f32.mrf.mxu0
    %v1340 = vadd.f32 %v1280, %v1339
    %v1341 = vpop.f32.mrf.mxu0
    %1342 = vdwg.mxu0
    %vm1343 = vcmask 1045504
    %v1344 = vsel %vm1343, %v1340, -inf
    %1345 = vmax.xlane.f32.xlu0 %v1344
    %v1346 = vpop.xlane.xlu0 %1345
    %v1347 = vsub.f32 %v1340, %v1346
    %v1348 = vmul.f32 %v1347, 1.442695
    %v1349 = vpow.pop %v1348
    %v1350 = vsel %vm1343, %v1349, 0.0
    %1351 = vadd.xlane.f32.xlu0 %v1350
    %v1352 = vpop.xlane.xlu0 %1351
    %v1353 = vlog2.pop %v1352
    %v1354 = vmul.f32 %v1353, 0.6931472
    %v1355 = vadd.f32 %v1354, %v1346
    %v1356 = vsub.f32 %v1340, %v1355
    %1357 = vst [vmem:[%s8] sm:$0x3f] %v1356
    // Predicated region
    $region46: #{lstm_forward.1} parent=1 // pred_check
      _
    $region47: #{lstm_forward.1} parent=1 // pred_check_branch
      %1359 = sbr.rel (0) target = $region49
    $region48: #{lstm_forward.1} parent=1 // pred_region
      _
    $region49: #{lstm_forward.1} parent=1 // pred_fallthru
      _
    // Predicated region
    $region50: #{lstm_forward.1} parent=1 // pred_check
      _
    $region51: #{lstm_forward.1} parent=1 // pred_check_branch
      %1361 = sbr.rel (0) target = $region53
    $region52: #{lstm_forward.1} parent=1 // pred_region
      _
    $region53: #{lstm_forward.1} parent=1 // pred_fallthru
      _
    // Predicated region
    $region54: #{lstm_forward.1} parent=1 // pred_check
      _
    $region55: #{lstm_forward.1} parent=1 // pred_check_branch
      %1363 = sbr.rel (0) target = $region57
    $region56: #{lstm_forward.1} parent=1 // pred_region
      _
    $region57: #{lstm_forward.1} parent=1 // pred_fallthru
      _
    // Predicated region
    $region58: #{lstm_forward.1} parent=1 // pred_check
      _
    $region59: #{lstm_forward.1} parent=1 // pred_check_branch
      %1365 = sbr.rel (0) target = $region61
    $region60: #{lstm_forward.1} parent=1 // pred_region
      _
    $region61: #{lstm_forward.1} parent=1 // pred_fallthru
      _
    // Predicated region
    $region62: #{lstm_forward.1} parent=1 // pred_check
      _
    $region63: #{lstm_forward.1} parent=1 // pred_check_branch
      %1367 = sbr.rel (0) target = $region65
    $region64: #{lstm_forward.1} parent=1 // pred_region
      _
    $region65: #{lstm_forward.1} parent=1 // pred_fallthru
      _
    // Predicated region
    $region66: #{lstm_forward.1} parent=1 // pred_check
      _
    $region67: #{lstm_forward.1} parent=1 // pred_check_branch
      %1369 = sbr.rel (0) target = $region69
    $region68: #{lstm_forward.1} parent=1 // pred_region
      _
    $region69: #{lstm_forward.1} parent=1 // pred_fallthru
      _
    %1370 = vsyncpa [#allocation3], 1
    %1371 = vsyncpa [#allocation5], 1

</llo_original>
